<compile_context>
chip_gen: v6e
topology: v6e:2x2x1
jax: 0.10.0
libtpu: 0.0.40
codegen_flags: <defaults>
</compile_context>

<pallas_src>
import jax
import jax.numpy as jnp
from jax.experimental import pallas as pl
from jax.experimental.pallas import tpu as pltpu


# ----------------------------------------------------------------------------
# Kernel
# ----------------------------------------------------------------------------
def _eca_kernel(x_ref,
                w1_ref, b1_ref,    # color_extract conv1 (+BN1 folded): (128, Cin) bf16 / (128, 1) f32
                w2_ref, b2_ref,    # color_extract conv2 (+BN2 folded): (64, 128) bf16 / (64, 1) f32
                wf_ref, bf_ref,    # fused [red1 | yellow1 | reconstruct | pad]: (R, 64) bf16 / (R, 1) f32
                w2h_ref, b2h_ref,  # stacked [red2 ; yellow2] weights: (64, 1) f32 / (2, 1) f32
                enh_ref, att_ref):
    cin = x_ref.shape[0]
    x = x_ref[...]                                                     # (Cin, TM) f32

    # color_extract: conv1x1(+BN) -> ReLU -> conv1x1(+BN) -> ReLU.
    # bf16 operands into the MXU, f32 accumulation; only the bf16 copy of each
    # intermediate stays live across the next dot.
    h1 = jnp.maximum(
        jnp.dot(w1_ref[...], x.astype(jnp.bfloat16),
                preferred_element_type=jnp.float32) + b1_ref[...], 0.0
    ).astype(jnp.bfloat16)                                             # (128, TM)
    cf = jnp.maximum(
        jnp.dot(w2_ref[...], h1,
                preferred_element_type=jnp.float32) + b2_ref[...], 0.0
    ).astype(jnp.bfloat16)                                             # (64, TM)

    # fused consumers of the color features (single MXU matmul):
    #   rows   0:32      -> red_attention   conv1 (ReLU below)
    #   rows  32:64      -> yellow_attention conv1 (ReLU below)
    #   rows 64:64+Cin   -> reconstruct (no activation)
    #   remaining rows   -> zero padding (to a multiple of 8)
    fused = jnp.dot(wf_ref[...], cf,
                    preferred_element_type=jnp.float32) + bf_ref[...]  # (R, TM)
    ry = jnp.maximum(fused[0:64, :], 0.0)                              # [relu(r1); relu(y1)] (64, TM)
    rec = fused[64:64 + cin, :]                                        # reconstruct          (Cin, TM)

    # Second 32->1 conv of each head on the VPU/XLU (broadcast multiply +
    # sublane reduction) instead of another MXU pass over ry.
    pre = ry * w2h_ref[...]                                            # (64, TM) f32
    red_pre = jnp.sum(pre[0:32, :], axis=0, keepdims=True) + b2h_ref[0:1, :]   # (1, TM)
    yel_pre = jnp.sum(pre[32:64, :], axis=0, keepdims=True) + b2h_ref[1:2, :]  # (1, TM)
    red = jax.nn.sigmoid(red_pre)                                      # (1, TM)
    yel = jax.nn.sigmoid(yel_pre)                                      # (1, TM)

    # combined = reconstruct(cf) * (red + yel);  enhanced = x * combined
    enh_ref[...] = x * (rec * (red + yel))
    att_ref[0:1, :] = red
    att_ref[1:2, :] = yel


# ----------------------------------------------------------------------------
# Wrapper
# ----------------------------------------------------------------------------
def _round_up(a, b):
    return ((a + b - 1) // b) * b


def _default_tile_and_vmem():
    """Per-chip defaults: large tiles on 128-MiB-VMEM chips (v5e/v6e), smaller
    tiles + tighter scoped-VMEM limit on v7x (64 MiB per TensorCore)."""
    try:
        cap = getattr(pltpu.get_tpu_info(), "vmem_capacity_bytes", None)
    except Exception:  # pragma: no cover - info query best-effort only
        cap = None
    if cap is not None and cap >= 96 * 1024 * 1024:
        return 8192, 48 * 1024 * 1024          # v5e / v6e
    return 4096, 24 * 1024 * 1024              # v7x / unknown


def _pick_tile_m(hw, n, requested):
    """Pixel-tile size: a multiple of 128 (or the full H*W), shrunk when needed
    so the grid keeps >=8 steps for 2-TensorCore sharding (v7x)."""
    requested = max(128, _round_up(requested, 128))
    if hw % 128 != 0 and hw <= requested:
        return hw                               # full-extent block is always legal
    tm = min(requested, _round_up(hw, 128))
    while n * pl.cdiv(hw, tm) < 8 and tm >= 1024:
        tm = _round_up(tm // 2, 128)
    return tm


def enhanced_color_attention(x_nchw, packed_params, *, tile_m=None, vmem_limit_bytes=None):
    """x_nchw: (N, Cin, H, W) float32.

    Returns (enhanced NCHW, red N1HW, yellow N1HW), matching the PyTorch module
    (eval-mode BatchNorm folded into the convs; bf16 MXU matmuls, f32 accum).
    """
    n, cin, h, w = x_nchw.shape
    hw = h * w

    default_tm, default_vmem = _default_tile_and_vmem()
    if tile_m is None:
        tile_m = default_tm
    if vmem_limit_bytes is None:
        vmem_limit_bytes = default_vmem
    tm = _pick_tile_m(hw, n, tile_m)
    grid = (n, pl.cdiv(hw, tm))

    # (N, Cin, H, W) -> (N, Cin, H*W): contiguous reshape, no HBM copy.
    x3 = x_nchw.reshape(n, cin, hw)

    (w1, b1, w2, b2, wf, bf, w2h, b2h) = packed_params

    col_spec = lambda c: pl.BlockSpec((None, c, tm), lambda b, i: (b, 0, i))
    full_spec = lambda p: pl.BlockSpec(p.shape, lambda b, i: (0, 0))    # resident weights

    in_specs = [col_spec(cin)] + [full_spec(p) for p in packed_params]
    out_specs = [col_spec(cin), col_spec(2)]
    out_shape = (
        jax.ShapeDtypeStruct((n, cin, hw), jnp.float32),
        jax.ShapeDtypeStruct((n, 2, hw), jnp.float32),
    )

    enh, att = pl.pallas_call(
        _eca_kernel,
        out_shape=out_shape,
        grid_spec=pltpu.PrefetchScalarGridSpec(
            num_scalar_prefetch=0,
            grid=grid,
            in_specs=in_specs,
            out_specs=out_specs,
        ),
        compiler_params=pltpu.CompilerParams(
            dimension_semantics=("parallel", "parallel"),
            vmem_limit_bytes=vmem_limit_bytes,
        ),
    )(x3, w1, b1, w2, b2, wf, bf, w2h, b2h)

    enh = enh.reshape(n, cin, h, w)
    red = att[:, 0:1, :].reshape(n, 1, h, w)
    yel = att[:, 1:2, :].reshape(n, 1, h, w)
    return enh, red, yel


# ----------------------------------------------------------------------------
# Parameter construction / packing
# ----------------------------------------------------------------------------
def make_params(in_channels, key):
    """Deterministic synthetic parameters in PyTorch-like layout (eval-mode BN)."""
    ks = jax.random.split(key, 22)

    def nrm(k, shape, scale=0.1):
        return scale * jax.random.normal(k, shape, jnp.float32)

    return dict(
        conv1_w=nrm(ks[0], (128, in_channels)), conv1_b=nrm(ks[1], (128,), 0.05),
        bn1_g=1.0 + nrm(ks[2], (128,)), bn1_b=nrm(ks[3], (128,), 0.05),
        bn1_m=nrm(ks[4], (128,)), bn1_v=1.0 + 0.1 * jax.random.uniform(ks[5], (128,)),
        conv2_w=nrm(ks[6], (64, 128)), conv2_b=nrm(ks[7], (64,), 0.05),
        bn2_g=1.0 + nrm(ks[8], (64,)), bn2_b=nrm(ks[9], (64,), 0.05),
        bn2_m=nrm(ks[10], (64,)), bn2_v=1.0 + 0.1 * jax.random.uniform(ks[11], (64,)),
        red1_w=nrm(ks[12], (32, 64)), red1_b=nrm(ks[13], (32,), 0.05),
        red2_w=nrm(ks[14], (1, 32)), red2_b=nrm(ks[15], (1,), 0.05),
        yel1_w=nrm(ks[16], (32, 64)), yel1_b=nrm(ks[17], (32,), 0.05),
        yel2_w=nrm(ks[18], (1, 32)), yel2_b=nrm(ks[19], (1,), 0.05),
        rec_w=nrm(ks[20], (in_channels, 64)), rec_b=nrm(ks[21], (in_channels,), 0.05),
    )


def pack_params(p, cin, eps=1e-5):
    """Fold eval-mode BN into convs, fuse the cf-consuming heads, cast MXU weights to bf16."""
    s1 = p["bn1_g"] / jnp.sqrt(p["bn1_v"] + eps)
    w1 = (p["conv1_w"] * s1[:, None]).astype(jnp.bfloat16)             # (128, Cin)
    b1 = ((p["conv1_b"] - p["bn1_m"]) * s1 + p["bn1_b"])[:, None]      # (128, 1) f32

    s2 = p["bn2_g"] / jnp.sqrt(p["bn2_v"] + eps)
    w2 = (p["conv2_w"] * s2[:, None]).astype(jnp.bfloat16)             # (64, 128)
    b2 = ((p["conv2_b"] - p["bn2_m"]) * s2 + p["bn2_b"])[:, None]      # (64, 1)

    # Fused consumers of the 64-ch color feature, padded only to a multiple of 8 rows.
    rows = _round_up(64 + cin, 8)
    wf = jnp.zeros((rows, 64), jnp.float32)
    wf = wf.at[0:32].set(p["red1_w"]).at[32:64].set(p["yel1_w"]).at[64:64 + cin].set(p["rec_w"])
    wf = wf.astype(jnp.bfloat16)                                       # (rows, 64)
    bf = jnp.zeros((rows, 1), jnp.float32)
    bf = bf.at[0:32, 0].set(p["red1_b"]).at[32:64, 0].set(p["yel1_b"]).at[64:64 + cin, 0].set(p["rec_b"])

    # Second-stage 32->1 head weights, stacked for the VPU/XLU path (stay f32).
    w2h = jnp.concatenate([p["red2_w"][0], p["yel2_w"][0]])[:, None]   # (64, 1)
    b2h = jnp.stack([p["red2_b"], p["yel2_b"]], axis=0)                # (2, 1)

    return (w1, b1, w2, b2, wf, bf, w2h, b2h)


# ----------------------------------------------------------------------------
# Pure-JAX reference (f32, eval-mode BN) for sanity checking
# ----------------------------------------------------------------------------
def _reference(x_nchw, p, eps=1e-5):
    n, cin, h, w = x_nchw.shape
    xf = jnp.transpose(x_nchw, (0, 2, 3, 1)).reshape(-1, cin)

    def bn(y, g, b, m, v):
        return (y - m) / jnp.sqrt(v + eps) * g + b

    h1 = jnp.maximum(bn(xf @ p["conv1_w"].T + p["conv1_b"],
                        p["bn1_g"], p["bn1_b"], p["bn1_m"], p["bn1_v"]), 0.0)
    cf = jnp.maximum(bn(h1 @ p["conv2_w"].T + p["conv2_b"],
                        p["bn2_g"], p["bn2_b"], p["bn2_m"], p["bn2_v"]), 0.0)
    red = jax.nn.sigmoid(
        jnp.maximum(cf @ p["red1_w"].T + p["red1_b"], 0.0) @ p["red2_w"].T + p["red2_b"])
    yel = jax.nn.sigmoid(
        jnp.maximum(cf @ p["yel1_w"].T + p["yel1_b"], 0.0) @ p["yel2_w"].T + p["yel2_b"])
    enh = xf * ((cf @ p["rec_w"].T + p["rec_b"]) * (red + yel))

    to_nchw = lambda a, c: jnp.transpose(a.reshape(n, h, w, c), (0, 3, 1, 2))
    return to_nchw(enh, cin), to_nchw(red, 1), to_nchw(yel, 1)


# ----------------------------------------------------------------------------
if __name__ == "__main__":
    key = jax.random.PRNGKey(0)
    kx, kp = jax.random.split(key)

    N, C, H, W = 2, 4, 16, 16            # small demo shapes; H*W = 256 per batch
    x = jax.random.normal(kx, (N, C, H, W), jnp.float32)
    raw_params = make_params(C, kp)
    packed = pack_params(raw_params, C)

    run = jax.jit(enhanced_color_attention)
    enh, red, yel = run(x, packed)
    jax.block_until_ready((enh, red, yel))

    # Sanity check against a pure-JAX f32 reference.  The kernel feeds bf16
    # operands to the MXU (f32 accumulation), so allow a small tolerance.
    enh_r, red_r, yel_r = _reference(x, raw_params)
    assert enh.shape == (N, C, H, W) and red.shape == (N, 1, H, W) and yel.shape == (N, 1, H, W)
    assert jnp.allclose(enh, enh_r, atol=2e-2, rtol=2e-2), float(jnp.max(jnp.abs(enh - enh_r)))
    assert jnp.allclose(red, red_r, atol=1e-2, rtol=1e-2), float(jnp.max(jnp.abs(red - red_r)))
    assert jnp.allclose(yel, yel_r, atol=1e-2, rtol=1e-2), float(jnp.max(jnp.abs(yel - yel_r)))

    print("KERNEL_OK")
</pallas_src>

<mosaic_0001>
module attributes {stable_mosaic.version = 11 : i64} {
  func.func @_eca_kernel(%arg0: i32, %arg1: i32, %arg2: memref<1x4x256xf32, #tpu.memory_space<vmem>>, %arg3: memref<128x4xbf16, #tpu.memory_space<vmem>>, %arg4: memref<128x1xf32, #tpu.memory_space<vmem>>, %arg5: memref<64x128xbf16, #tpu.memory_space<vmem>>, %arg6: memref<64x1xf32, #tpu.memory_space<vmem>>, %arg7: memref<72x64xbf16, #tpu.memory_space<vmem>>, %arg8: memref<72x1xf32, #tpu.memory_space<vmem>>, %arg9: memref<64x1xf32, #tpu.memory_space<vmem>>, %arg10: memref<2x1xf32, #tpu.memory_space<vmem>>, %arg11: memref<1x4x256xf32, #tpu.memory_space<vmem>>, %arg12: memref<1x2x256xf32, #tpu.memory_space<vmem>>) attributes {dimension_semantics = [#tpu.dimension_semantics<parallel>, #tpu.dimension_semantics<parallel>], iteration_bounds = array<i64: 2, 1>, scalar_prefetch = 0 : i64, scratch_operands = 0 : i64, tpu.core_type = #tpu.core_type<tc>, window_params = [{transform_indices = @transform_0, window_bounds = array<i64: 1, 4, 256>}, {pipeline_mode = #tpu.pipeline_mode<synchronous>, transform_indices = @transform_1, window_bounds = array<i64: 128, 4>}, {pipeline_mode = #tpu.pipeline_mode<synchronous>, transform_indices = @transform_2, window_bounds = array<i64: 128, 1>}, {pipeline_mode = #tpu.pipeline_mode<synchronous>, transform_indices = @transform_3, window_bounds = array<i64: 64, 128>}, {pipeline_mode = #tpu.pipeline_mode<synchronous>, transform_indices = @transform_4, window_bounds = array<i64: 64, 1>}, {pipeline_mode = #tpu.pipeline_mode<synchronous>, transform_indices = @transform_5, window_bounds = array<i64: 72, 64>}, {pipeline_mode = #tpu.pipeline_mode<synchronous>, transform_indices = @transform_6, window_bounds = array<i64: 72, 1>}, {pipeline_mode = #tpu.pipeline_mode<synchronous>, transform_indices = @transform_7, window_bounds = array<i64: 64, 1>}, {pipeline_mode = #tpu.pipeline_mode<synchronous>, transform_indices = @transform_8, window_bounds = array<i64: 2, 1>}, {transform_indices = @transform_9, window_bounds = array<i64: 1, 4, 256>}, {transform_indices = @transform_10, window_bounds = array<i64: 1, 2, 256>}]} {
    %c0 = arith.constant 0 : index
    %c0_0 = arith.constant 0 : index
    %c0_1 = arith.constant 0 : index
    %0 = vector.load %arg2[%c0, %c0_0, %c0_1] : memref<1x4x256xf32, #tpu.memory_space<vmem>>, vector<1x4x256xf32>
    %1 = vector.shape_cast %0 : vector<1x4x256xf32> to vector<4x256xf32>
    %c0_2 = arith.constant 0 : index
    %c0_3 = arith.constant 0 : index
    %2 = vector.load %arg3[%c0_2, %c0_3] : memref<128x4xbf16, #tpu.memory_space<vmem>>, vector<128x4xbf16>
    %3 = arith.truncf %1 : vector<4x256xf32> to vector<4x256xbf16>
    %cst = arith.constant dense<0.000000e+00> : vector<128x256xf32>
    %4 = tpu.matmul %2, %3, %cst {dimension_numbers = #tpu.dot_dimension_numbers<[1], [0], [0], [1], [0, 0, 1, 1], [], []>} : vector<128x4xbf16>, vector<4x256xbf16>, vector<128x256xf32> -> vector<128x256xf32>
    %c0_4 = arith.constant 0 : index
    %c0_5 = arith.constant 0 : index
    %5 = vector.load %arg4[%c0_4, %c0_5] : memref<128x1xf32, #tpu.memory_space<vmem>>, vector<128x1xf32>
    %6 = vector.broadcast %5 : vector<128x1xf32> to vector<128x256xf32>
    %7 = arith.addf %4, %6 : vector<128x256xf32>
    %cst_6 = arith.constant 0.000000e+00 : f32
    %8 = vector.broadcast %cst_6 : f32 to vector<128x256xf32>
    %9 = arith.maximumf %7, %8 : vector<128x256xf32>
    %10 = arith.truncf %9 : vector<128x256xf32> to vector<128x256xbf16>
    %c0_7 = arith.constant 0 : index
    %c0_8 = arith.constant 0 : index
    %11 = vector.load %arg5[%c0_7, %c0_8] : memref<64x128xbf16, #tpu.memory_space<vmem>>, vector<64x128xbf16>
    %cst_9 = arith.constant dense<0.000000e+00> : vector<64x256xf32>
    %12 = tpu.matmul %11, %10, %cst_9 {dimension_numbers = #tpu.dot_dimension_numbers<[1], [0], [0], [1], [0, 0, 1, 1], [], []>} : vector<64x128xbf16>, vector<128x256xbf16>, vector<64x256xf32> -> vector<64x256xf32>
    %c0_10 = arith.constant 0 : index
    %c0_11 = arith.constant 0 : index
    %13 = vector.load %arg6[%c0_10, %c0_11] : memref<64x1xf32, #tpu.memory_space<vmem>>, vector<64x1xf32>
    %14 = vector.broadcast %13 : vector<64x1xf32> to vector<64x256xf32>
    %15 = arith.addf %12, %14 : vector<64x256xf32>
    %cst_12 = arith.constant 0.000000e+00 : f32
    %16 = vector.broadcast %cst_12 : f32 to vector<64x256xf32>
    %17 = arith.maximumf %15, %16 : vector<64x256xf32>
    %18 = arith.truncf %17 : vector<64x256xf32> to vector<64x256xbf16>
    %c0_13 = arith.constant 0 : index
    %c0_14 = arith.constant 0 : index
    %19 = vector.load %arg7[%c0_13, %c0_14] : memref<72x64xbf16, #tpu.memory_space<vmem>>, vector<72x64xbf16>
    %cst_15 = arith.constant dense<0.000000e+00> : vector<72x256xf32>
    %20 = tpu.matmul %19, %18, %cst_15 {dimension_numbers = #tpu.dot_dimension_numbers<[1], [0], [0], [1], [0, 0, 1, 1], [], []>} : vector<72x64xbf16>, vector<64x256xbf16>, vector<72x256xf32> -> vector<72x256xf32>
    %c0_16 = arith.constant 0 : index
    %c0_17 = arith.constant 0 : index
    %21 = vector.load %arg8[%c0_16, %c0_17] : memref<72x1xf32, #tpu.memory_space<vmem>>, vector<72x1xf32>
    %22 = vector.broadcast %21 : vector<72x1xf32> to vector<72x256xf32>
    %23 = arith.addf %20, %22 : vector<72x256xf32>
    %24 = vector.extract_strided_slice %23 {offsets = [0, 0], sizes = [64, 256], strides = [1, 1]} : vector<72x256xf32> to vector<64x256xf32>
    %cst_18 = arith.constant 0.000000e+00 : f32
    %25 = vector.broadcast %cst_18 : f32 to vector<64x256xf32>
    %26 = arith.maximumf %24, %25 : vector<64x256xf32>
    %27 = vector.extract_strided_slice %23 {offsets = [64, 0], sizes = [4, 256], strides = [1, 1]} : vector<72x256xf32> to vector<4x256xf32>
    %c0_19 = arith.constant 0 : index
    %c0_20 = arith.constant 0 : index
    %28 = vector.load %arg9[%c0_19, %c0_20] : memref<64x1xf32, #tpu.memory_space<vmem>>, vector<64x1xf32>
    %29 = vector.broadcast %28 : vector<64x1xf32> to vector<64x256xf32>
    %30 = arith.mulf %26, %29 : vector<64x256xf32>
    %31 = vector.extract_strided_slice %30 {offsets = [0, 0], sizes = [32, 256], strides = [1, 1]} : vector<64x256xf32> to vector<32x256xf32>
    %cst_21 = arith.constant dense<0.000000e+00> : vector<256xf32>
    %32 = vector.multi_reduction <add>, %31, %cst_21 [0] : vector<32x256xf32> to vector<256xf32>
    %33 = vector.shape_cast %32 : vector<256xf32> to vector<1x256xf32>
    %c0_22 = arith.constant 0 : index
    %c0_23 = arith.constant 0 : index
    %34 = vector.load %arg10[%c0_22, %c0_23] : memref<2x1xf32, #tpu.memory_space<vmem>>, vector<1x1xf32>
    %35 = vector.broadcast %34 : vector<1x1xf32> to vector<1x256xf32>
    %36 = arith.addf %33, %35 : vector<1x256xf32>
    %37 = vector.extract_strided_slice %30 {offsets = [32, 0], sizes = [32, 256], strides = [1, 1]} : vector<64x256xf32> to vector<32x256xf32>
    %cst_24 = arith.constant dense<0.000000e+00> : vector<256xf32>
    %38 = vector.multi_reduction <add>, %37, %cst_24 [0] : vector<32x256xf32> to vector<256xf32>
    %39 = vector.shape_cast %38 : vector<256xf32> to vector<1x256xf32>
    %c1 = arith.constant 1 : index
    %c0_25 = arith.constant 0 : index
    %40 = vector.load %arg10[%c1, %c0_25] : memref<2x1xf32, #tpu.memory_space<vmem>>, vector<1x1xf32>
    %41 = vector.broadcast %40 : vector<1x1xf32> to vector<1x256xf32>
    %42 = arith.addf %39, %41 : vector<1x256xf32>
    %43 = arith.negf %36 : vector<1x256xf32>
    %44 = math.exp %43 : vector<1x256xf32>
    %cst_26 = arith.constant 1.000000e+00 : f32
    %45 = vector.broadcast %cst_26 : f32 to vector<1x256xf32>
    %46 = arith.addf %45, %44 : vector<1x256xf32>
    %47 = arith.divf %45, %46 : vector<1x256xf32>
    %48 = arith.negf %42 : vector<1x256xf32>
    %49 = math.exp %48 : vector<1x256xf32>
    %cst_27 = arith.constant 1.000000e+00 : f32
    %50 = vector.broadcast %cst_27 : f32 to vector<1x256xf32>
    %51 = arith.addf %50, %49 : vector<1x256xf32>
    %52 = arith.divf %50, %51 : vector<1x256xf32>
    %53 = arith.addf %47, %52 : vector<1x256xf32>
    %54 = vector.broadcast %53 : vector<1x256xf32> to vector<4x256xf32>
    %55 = arith.mulf %27, %54 : vector<4x256xf32>
    %56 = arith.mulf %1, %55 : vector<4x256xf32>
    %c0_28 = arith.constant 0 : index
    %c0_29 = arith.constant 0 : index
    %c0_30 = arith.constant 0 : index
    %57 = vector.load %arg11[%c0_28, %c0_29, %c0_30] : memref<1x4x256xf32, #tpu.memory_space<vmem>>, vector<1x4x256xf32>
    %58 = vector.shape_cast %57 : vector<1x4x256xf32> to vector<4x256xf32>
    %59 = vector.shape_cast %56 : vector<4x256xf32> to vector<1x4x256xf32>
    tpu.vector_store %arg11[%c0_28, %c0_29, %c0_30], %59 {strides = array<i32>} : memref<1x4x256xf32, #tpu.memory_space<vmem>>, vector<1x4x256xf32>,
    %c0_31 = arith.constant 0 : index
    %c0_32 = arith.constant 0 : index
    %c0_33 = arith.constant 0 : index
    %60 = vector.load %arg12[%c0_31, %c0_32, %c0_33] : memref<1x2x256xf32, #tpu.memory_space<vmem>>, vector<1x1x256xf32>
    %61 = vector.shape_cast %60 : vector<1x1x256xf32> to vector<1x256xf32>
    %62 = vector.shape_cast %47 : vector<1x256xf32> to vector<1x1x256xf32>
    tpu.vector_store %arg12[%c0_31, %c0_32, %c0_33], %62 {strides = array<i32>} : memref<1x2x256xf32, #tpu.memory_space<vmem>>, vector<1x1x256xf32>,
    %c0_34 = arith.constant 0 : index
    %c1_35 = arith.constant 1 : index
    %c0_36 = arith.constant 0 : index
    %63 = vector.load %arg12[%c0_34, %c1_35, %c0_36] : memref<1x2x256xf32, #tpu.memory_space<vmem>>, vector<1x1x256xf32>
    %64 = vector.shape_cast %63 : vector<1x1x256xf32> to vector<1x256xf32>
    %65 = vector.shape_cast %52 : vector<1x256xf32> to vector<1x1x256xf32>
    tpu.vector_store %arg12[%c0_34, %c1_35, %c0_36], %65 {strides = array<i32>} : memref<1x2x256xf32, #tpu.memory_space<vmem>>, vector<1x1x256xf32>,
    return
  }
  func.func @transform_0(%arg0: i32, %arg1: i32) -> (i32, i32, i32) {
    %c0_i32 = arith.constant 0 : i32
    %c0_i32_0 = arith.constant 0 : i32
    return %arg0, %c0_i32, %arg1 : i32, i32, i32
  }
  func.func @transform_1(%arg0: i32, %arg1: i32) -> (i32, i32) {
    %c0_i32 = arith.constant 0 : i32
    %c0_i32_0 = arith.constant 0 : i32
    %c0_i32_1 = arith.constant 0 : i32
    return %c0_i32, %c0_i32_0 : i32, i32
  }
  func.func @transform_2(%arg0: i32, %arg1: i32) -> (i32, i32) {
    %c0_i32 = arith.constant 0 : i32
    %c0_i32_0 = arith.constant 0 : i32
    %c0_i32_1 = arith.constant 0 : i32
    return %c0_i32, %c0_i32_0 : i32, i32
  }
  func.func @transform_3(%arg0: i32, %arg1: i32) -> (i32, i32) {
    %c0_i32 = arith.constant 0 : i32
    %c0_i32_0 = arith.constant 0 : i32
    %c0_i32_1 = arith.constant 0 : i32
    return %c0_i32, %c0_i32_0 : i32, i32
  }
  func.func @transform_4(%arg0: i32, %arg1: i32) -> (i32, i32) {
    %c0_i32 = arith.constant 0 : i32
    %c0_i32_0 = arith.constant 0 : i32
    %c0_i32_1 = arith.constant 0 : i32
    return %c0_i32, %c0_i32_0 : i32, i32
  }
  func.func @transform_5(%arg0: i32, %arg1: i32) -> (i32, i32) {
    %c0_i32 = arith.constant 0 : i32
    %c0_i32_0 = arith.constant 0 : i32
    %c0_i32_1 = arith.constant 0 : i32
    return %c0_i32, %c0_i32_0 : i32, i32
  }
  func.func @transform_6(%arg0: i32, %arg1: i32) -> (i32, i32) {
    %c0_i32 = arith.constant 0 : i32
    %c0_i32_0 = arith.constant 0 : i32
    %c0_i32_1 = arith.constant 0 : i32
    return %c0_i32, %c0_i32_0 : i32, i32
  }
  func.func @transform_7(%arg0: i32, %arg1: i32) -> (i32, i32) {
    %c0_i32 = arith.constant 0 : i32
    %c0_i32_0 = arith.constant 0 : i32
    %c0_i32_1 = arith.constant 0 : i32
    return %c0_i32, %c0_i32_0 : i32, i32
  }
  func.func @transform_8(%arg0: i32, %arg1: i32) -> (i32, i32) {
    %c0_i32 = arith.constant 0 : i32
    %c0_i32_0 = arith.constant 0 : i32
    %c0_i32_1 = arith.constant 0 : i32
    return %c0_i32, %c0_i32_0 : i32, i32
  }
  func.func @transform_9(%arg0: i32, %arg1: i32) -> (i32, i32, i32) {
    %c0_i32 = arith.constant 0 : i32
    %c0_i32_0 = arith.constant 0 : i32
    return %arg0, %c0_i32, %arg1 : i32, i32, i32
  }
  func.func @transform_10(%arg0: i32, %arg1: i32) -> (i32, i32, i32) {
    %c0_i32 = arith.constant 0 : i32
    %c0_i32_0 = arith.constant 0 : i32
    return %arg0, %c0_i32, %arg1 : i32, i32, i32
  }
}

</mosaic_0001>

<llo_original>
// kernel: enhanced_color_attention.1
$region0: #{enhanced_color_attention.1}
  #allocation0 [shape = 'u32[]', space=smem, size = 0x4, offset = 0x4, fixed_abs, tag = 'smem constant byte address 0x4 - core index']
  #allocation1 [shape = 'u32[144,128]{1,0:T(1,128)}', space=vmem, size = 0x12000, scoped, tag = 'internal scratch']
  %s0 = inlined_call_operand.vmem [shape: f32[2,4,256], index: 0, kind: input, shape index: {}]
  %s1 = inlined_call_operand.vmem [shape: bf16[128,4], index: 1, kind: input, shape index: {}]
  %s2 = inlined_call_operand.vmem [shape: f32[128,1], index: 2, kind: input, shape index: {}]
  %s3 = inlined_call_operand.vmem [shape: bf16[64,128], index: 3, kind: input, shape index: {}]
  %s4 = inlined_call_operand.vmem [shape: f32[64,1], index: 4, kind: input, shape index: {}]
  %s5 = inlined_call_operand.vmem [shape: bf16[72,64], index: 5, kind: input, shape index: {}]
  %s6 = inlined_call_operand.vmem [shape: f32[72,1], index: 6, kind: input, shape index: {}]
  %s7 = inlined_call_operand.vmem [shape: f32[64,1], index: 7, kind: input, shape index: {}]
  %s8 = inlined_call_operand.vmem [shape: f32[2,1], index: 8, kind: input, shape index: {}]
  %s9 = inlined_call_operand.vmem [shape: f32[2,4,256], index: 9, kind: output, shape index: {0}]
  %s10 = inlined_call_operand.vmem [shape: f32[2,2,256], index: 10, kind: output, shape index: {1}]
  %11 = xla_tuple %s9, %s10
  %s12 = sld [smem:[#allocation0]]
  $region77: #{enhanced_color_attention.1} parent=0
    _
  %s14 = ssub.s32 1, %s12
  %s15 = scalar_select 0, %s14, %s12
  loop: start=0, step=1, limit=4
  $region2: #{enhanced_color_attention.1} parent=0 // loop_pre_header
    _
  $region3: #{enhanced_color_attention.1} parent=0 // loop_header
    %s17 = sphi 0, %s21
    %p18 = scmp.ge.s32.totalorder %s17, 4
    %s24 = sphi 0, %s36
    %s25 = sphi 0, %s32
    %s26 = sphi 0, %s24
    %s27 = sphi 0, %s25
    %s28 = sphi 0, %s26
    %s29 = sphi 0, %s27
    %s41 = sphi 0, %s43
    %s44 = sphi 0, %s41
    %s45 = sphi 0, %s44
    %s61 = sphi 0, %s45
    %s65 = sphi 0, %s65
    %s67 = sphi 0, %s65
    %s68 = sphi 0, %s67
    %s82 = sphi 0, %s68
    %s86 = sphi 0, %s86
    %s88 = sphi 0, %s86
    %s89 = sphi 0, %s88
    %s103 = sphi 0, %s89
    %s107 = sphi 0, %s107
    %s109 = sphi 0, %s107
    %s110 = sphi 0, %s109
    %s124 = sphi 0, %s110
    %s128 = sphi 0, %s128
    %s130 = sphi 0, %s128
    %s131 = sphi 0, %s130
    %s145 = sphi 0, %s131
    %s149 = sphi 0, %s149
    %s151 = sphi 0, %s149
    %s152 = sphi 0, %s151
    %s166 = sphi 0, %s152
    %s170 = sphi 0, %s170
    %s172 = sphi 0, %s170
    %s173 = sphi 0, %s172
    %s187 = sphi 0, %s173
    %s191 = sphi 0, %s191
    %s193 = sphi 0, %s191
    %s194 = sphi 0, %s193
    %s208 = sphi 0, %s194
    %s212 = sphi 0, %s212
    %s214 = sphi 0, %s212
    %s215 = sphi 0, %s214
    %s229 = sphi 0, %s215
    %s237 = sphi 0, %s239
    %s240 = sphi 0, %s237
    %s241 = sphi 0, %s240
    %s257 = sphi 0, %s241
    %s265 = sphi 0, %s267
    %s268 = sphi 0, %s265
    %s269 = sphi 0, %s268
    %s285 = sphi 0, %s269
  $region4: #{enhanced_color_attention.1} parent=0 // loop_header_branch
    %20 = sbr.rel (%p18) target = $region8
  $region5: #{enhanced_color_attention.1} parent=0 // loop_body
    %s22 = ssub.s32 %s17, 1
    %s23 = ssub.s32 %s17, 2
    %s30 = sadd.s32 1, %s25
    %p31 = scmp.ge.s32.totalorder %s30, 1
    %s32 = scalar_select %p31, 0, %s30
    %s33 = sadd.s32 1, %s24
    %s34 = scalar_select %p31, %s33, %s24
    %p35 = scmp.ge.s32.totalorder %s34, 2
    %s36 = scalar_select %p35, 0, %s34
    %s37 = ssub.s32 %s24, %s36
    %s38 = ssub.s32 %s25, %s32
    %s39 = sor.u32 %s37, %s38
    %p40 = scmp.eq.s32.totalorder %s39, 0
    %s42 = sadd.s32 %s41, 1
    %s43 = scalar_select %p40, %s41, %s42
    %p46 = pneg %p40
    %p47 = scmp.eq.s32.totalorder %s17, 1
    %p48 = por %p46, %p47
    %p49 = scmp.ne.s32.totalorder %s41, %s44
    %p50 = scmp.eq.s32.totalorder %s17, 0
    %p51 = por %p49, %p50
    %p52 = scmp.ne.s32.totalorder %s41, %s44
    %p53 = scmp.eq.s32.totalorder %s22, 1
    %p54 = por %p52, %p53
    %p55 = scmp.ne.s32.totalorder %s44, %s45
    %p56 = scmp.eq.s32.totalorder %s22, 0
    %p57 = por %p55, %p56
    %p58 = scmp.ne.s32.totalorder %s44, %s45
    %p59 = scmp.eq.s32.totalorder %s23, 1
    %p60 = por %p58, %p59
    %p62 = scmp.ne.s32.totalorder %s45, %s61
    %p63 = scmp.eq.s32.totalorder %s23, 0
    %p64 = por %p62, %p63
    %s66 = sadd.s32 %s65, 1
    %p69 = scmp.eq.s32.totalorder %s17, 1
    %p70 = scmp.ne.s32.totalorder %s65, %s67
    %p71 = scmp.eq.s32.totalorder %s17, 0
    %p72 = por %p70, %p71
    %p73 = scmp.ne.s32.totalorder %s65, %s67
    %p74 = scmp.eq.s32.totalorder %s22, 1
    %p75 = por %p73, %p74
    %p76 = scmp.ne.s32.totalorder %s67, %s68
    %p77 = scmp.eq.s32.totalorder %s22, 0
    %p78 = por %p76, %p77
    %p79 = scmp.ne.s32.totalorder %s67, %s68
    %p80 = scmp.eq.s32.totalorder %s23, 1
    %p81 = por %p79, %p80
    %p83 = scmp.ne.s32.totalorder %s68, %s82
    %p84 = scmp.eq.s32.totalorder %s23, 0
    %p85 = por %p83, %p84
    %s87 = sadd.s32 %s86, 1
    %p90 = scmp.eq.s32.totalorder %s17, 1
    %p91 = scmp.ne.s32.totalorder %s86, %s88
    %p92 = scmp.eq.s32.totalorder %s17, 0
    %p93 = por %p91, %p92
    %p94 = scmp.ne.s32.totalorder %s86, %s88
    %p95 = scmp.eq.s32.totalorder %s22, 1
    %p96 = por %p94, %p95
    %p97 = scmp.ne.s32.totalorder %s88, %s89
    %p98 = scmp.eq.s32.totalorder %s22, 0
    %p99 = por %p97, %p98
    %p100 = scmp.ne.s32.totalorder %s88, %s89
    %p101 = scmp.eq.s32.totalorder %s23, 1
    %p102 = por %p100, %p101
    %p104 = scmp.ne.s32.totalorder %s89, %s103
    %p105 = scmp.eq.s32.totalorder %s23, 0
    %p106 = por %p104, %p105
    %s108 = sadd.s32 %s107, 1
    %p111 = scmp.eq.s32.totalorder %s17, 1
    %p112 = scmp.ne.s32.totalorder %s107, %s109
    %p113 = scmp.eq.s32.totalorder %s17, 0
    %p114 = por %p112, %p113
    %p115 = scmp.ne.s32.totalorder %s107, %s109
    %p116 = scmp.eq.s32.totalorder %s22, 1
    %p117 = por %p115, %p116
    %p118 = scmp.ne.s32.totalorder %s109, %s110
    %p119 = scmp.eq.s32.totalorder %s22, 0
    %p120 = por %p118, %p119
    %p121 = scmp.ne.s32.totalorder %s109, %s110
    %p122 = scmp.eq.s32.totalorder %s23, 1
    %p123 = por %p121, %p122
    %p125 = scmp.ne.s32.totalorder %s110, %s124
    %p126 = scmp.eq.s32.totalorder %s23, 0
    %p127 = por %p125, %p126
    %s129 = sadd.s32 %s128, 1
    %p132 = scmp.eq.s32.totalorder %s17, 1
    %p133 = scmp.ne.s32.totalorder %s128, %s130
    %p134 = scmp.eq.s32.totalorder %s17, 0
    %p135 = por %p133, %p134
    %p136 = scmp.ne.s32.totalorder %s128, %s130
    %p137 = scmp.eq.s32.totalorder %s22, 1
    %p138 = por %p136, %p137
    %p139 = scmp.ne.s32.totalorder %s130, %s131
    %p140 = scmp.eq.s32.totalorder %s22, 0
    %p141 = por %p139, %p140
    %p142 = scmp.ne.s32.totalorder %s130, %s131
    %p143 = scmp.eq.s32.totalorder %s23, 1
    %p144 = por %p142, %p143
    %p146 = scmp.ne.s32.totalorder %s131, %s145
    %p147 = scmp.eq.s32.totalorder %s23, 0
    %p148 = por %p146, %p147
    %s150 = sadd.s32 %s149, 1
    %p153 = scmp.eq.s32.totalorder %s17, 1
    %p154 = scmp.ne.s32.totalorder %s149, %s151
    %p155 = scmp.eq.s32.totalorder %s17, 0
    %p156 = por %p154, %p155
    %p157 = scmp.ne.s32.totalorder %s149, %s151
    %p158 = scmp.eq.s32.totalorder %s22, 1
    %p159 = por %p157, %p158
    %p160 = scmp.ne.s32.totalorder %s151, %s152
    %p161 = scmp.eq.s32.totalorder %s22, 0
    %p162 = por %p160, %p161
    %p163 = scmp.ne.s32.totalorder %s151, %s152
    %p164 = scmp.eq.s32.totalorder %s23, 1
    %p165 = por %p163, %p164
    %p167 = scmp.ne.s32.totalorder %s152, %s166
    %p168 = scmp.eq.s32.totalorder %s23, 0
    %p169 = por %p167, %p168
    %s171 = sadd.s32 %s170, 1
    %p174 = scmp.eq.s32.totalorder %s17, 1
    %p175 = scmp.ne.s32.totalorder %s170, %s172
    %p176 = scmp.eq.s32.totalorder %s17, 0
    %p177 = por %p175, %p176
    %p178 = scmp.ne.s32.totalorder %s170, %s172
    %p179 = scmp.eq.s32.totalorder %s22, 1
    %p180 = por %p178, %p179
    %p181 = scmp.ne.s32.totalorder %s172, %s173
    %p182 = scmp.eq.s32.totalorder %s22, 0
    %p183 = por %p181, %p182
    %p184 = scmp.ne.s32.totalorder %s172, %s173
    %p185 = scmp.eq.s32.totalorder %s23, 1
    %p186 = por %p184, %p185
    %p188 = scmp.ne.s32.totalorder %s173, %s187
    %p189 = scmp.eq.s32.totalorder %s23, 0
    %p190 = por %p188, %p189
    %s192 = sadd.s32 %s191, 1
    %p195 = scmp.eq.s32.totalorder %s17, 1
    %p196 = scmp.ne.s32.totalorder %s191, %s193
    %p197 = scmp.eq.s32.totalorder %s17, 0
    %p198 = por %p196, %p197
    %p199 = scmp.ne.s32.totalorder %s191, %s193
    %p200 = scmp.eq.s32.totalorder %s22, 1
    %p201 = por %p199, %p200
    %p202 = scmp.ne.s32.totalorder %s193, %s194
    %p203 = scmp.eq.s32.totalorder %s22, 0
    %p204 = por %p202, %p203
    %p205 = scmp.ne.s32.totalorder %s193, %s194
    %p206 = scmp.eq.s32.totalorder %s23, 1
    %p207 = por %p205, %p206
    %p209 = scmp.ne.s32.totalorder %s194, %s208
    %p210 = scmp.eq.s32.totalorder %s23, 0
    %p211 = por %p209, %p210
    %s213 = sadd.s32 %s212, 1
    %p216 = scmp.eq.s32.totalorder %s17, 1
    %p217 = scmp.ne.s32.totalorder %s212, %s214
    %p218 = scmp.eq.s32.totalorder %s17, 0
    %p219 = por %p217, %p218
    %p220 = scmp.ne.s32.totalorder %s212, %s214
    %p221 = scmp.eq.s32.totalorder %s22, 1
    %p222 = por %p220, %p221
    %p223 = scmp.ne.s32.totalorder %s214, %s215
    %p224 = scmp.eq.s32.totalorder %s22, 0
    %p225 = por %p223, %p224
    %p226 = scmp.ne.s32.totalorder %s214, %s215
    %p227 = scmp.eq.s32.totalorder %s23, 1
    %p228 = por %p226, %p227
    %p230 = scmp.ne.s32.totalorder %s215, %s229
    %p231 = scmp.eq.s32.totalorder %s23, 0
    %p232 = por %p230, %p231
    %s233 = ssub.s32 %s24, %s36
    %s234 = ssub.s32 %s25, %s32
    %s235 = sor.u32 %s233, %s234
    %p236 = scmp.eq.s32.totalorder %s235, 0
    %s238 = sadd.s32 %s237, 1
    %s239 = scalar_select %p236, %s237, %s238
    %p242 = pneg %p236
    %p243 = scmp.eq.s32.totalorder %s17, 1
    %p244 = por %p242, %p243
    %p245 = scmp.ne.s32.totalorder %s237, %s240
    %p246 = scmp.eq.s32.totalorder %s17, 0
    %p247 = por %p245, %p246
    %p248 = scmp.ne.s32.totalorder %s237, %s240
    %p249 = scmp.eq.s32.totalorder %s22, 1
    %p250 = por %p248, %p249
    %p251 = scmp.ne.s32.totalorder %s240, %s241
    %p252 = scmp.eq.s32.totalorder %s22, 0
    %p253 = por %p251, %p252
    %p254 = scmp.ne.s32.totalorder %s240, %s241
    %p255 = scmp.eq.s32.totalorder %s23, 1
    %p256 = por %p254, %p255
    %p258 = scmp.ne.s32.totalorder %s241, %s257
    %p259 = scmp.eq.s32.totalorder %s23, 0
    %p260 = por %p258, %p259
    %s261 = ssub.s32 %s24, %s36
    %s262 = ssub.s32 %s25, %s32
    %s263 = sor.u32 %s261, %s262
    %p264 = scmp.eq.s32.totalorder %s263, 0
    %s266 = sadd.s32 %s265, 1
    %s267 = scalar_select %p264, %s265, %s266
    %p270 = pneg %p264
    %p271 = scmp.eq.s32.totalorder %s17, 1
    %p272 = por %p270, %p271
    %p273 = scmp.ne.s32.totalorder %s265, %s268
    %p274 = scmp.eq.s32.totalorder %s17, 0
    %p275 = por %p273, %p274
    %p276 = scmp.ne.s32.totalorder %s265, %s268
    %p277 = scmp.eq.s32.totalorder %s22, 1
    %p278 = por %p276, %p277
    %p279 = scmp.ne.s32.totalorder %s268, %s269
    %p280 = scmp.eq.s32.totalorder %s22, 0
    %p281 = por %p279, %p280
    %p282 = scmp.ne.s32.totalorder %s268, %s269
    %p283 = scmp.eq.s32.totalorder %s23, 1
    %p284 = por %p282, %p283
    %p286 = scmp.ne.s32.totalorder %s269, %s285
    %p287 = scmp.eq.s32.totalorder %s23, 0
    %p288 = por %p286, %p287
    %p289 = scmp.le.s32.totalorder 1, %s17
    %p290 = scmp.lt.s32.totalorder %s17, 3
    %p291 = pnand %p289, %p290
    %p292 = pneg %p291
    // Predicated region
    $region9: #{enhanced_color_attention.1} parent=5 // pred_check
      _
    $region10: #{enhanced_color_attention.1} parent=5 // pred_check_branch
      %294 = sbr.rel (%p291) target = $region12
    $region11: #{enhanced_color_attention.1} parent=5 // pred_region
      %s295 = ssub.s32 %s17, 1
      // Predicated region
      $region13: #{enhanced_color_attention.1} parent=11 // pred_check
        %p296 = pneg %p78
      $region14: #{enhanced_color_attention.1} parent=11 // pred_check_branch
        %298 = sbr.rel (%p296) target = $region16
      $region15: #{enhanced_color_attention.1} parent=11 // pred_region
        _
      $region16: #{enhanced_color_attention.1} parent=11 // pred_fallthru
        _
      // Predicated region
      $region17: #{enhanced_color_attention.1} parent=11 // pred_check
        %p299 = pneg %p99
      $region18: #{enhanced_color_attention.1} parent=11 // pred_check_branch
        %301 = sbr.rel (%p299) target = $region20
      $region19: #{enhanced_color_attention.1} parent=11 // pred_region
        _
      $region20: #{enhanced_color_attention.1} parent=11 // pred_fallthru
        _
      // Predicated region
      $region21: #{enhanced_color_attention.1} parent=11 // pred_check
        %p302 = pneg %p120
      $region22: #{enhanced_color_attention.1} parent=11 // pred_check_branch
        %304 = sbr.rel (%p302) target = $region24
      $region23: #{enhanced_color_attention.1} parent=11 // pred_region
        _
      $region24: #{enhanced_color_attention.1} parent=11 // pred_fallthru
        _
      // Predicated region
      $region25: #{enhanced_color_attention.1} parent=11 // pred_check
        %p305 = pneg %p141
      $region26: #{enhanced_color_attention.1} parent=11 // pred_check_branch
        %307 = sbr.rel (%p305) target = $region28
      $region27: #{enhanced_color_attention.1} parent=11 // pred_region
        _
      $region28: #{enhanced_color_attention.1} parent=11 // pred_fallthru
        _
      // Predicated region
      $region29: #{enhanced_color_attention.1} parent=11 // pred_check
        %p308 = pneg %p162
      $region30: #{enhanced_color_attention.1} parent=11 // pred_check_branch
        %310 = sbr.rel (%p308) target = $region32
      $region31: #{enhanced_color_attention.1} parent=11 // pred_region
        _
      $region32: #{enhanced_color_attention.1} parent=11 // pred_fallthru
        _
      // Predicated region
      $region33: #{enhanced_color_attention.1} parent=11 // pred_check
        %p311 = pneg %p183
      $region34: #{enhanced_color_attention.1} parent=11 // pred_check_branch
        %313 = sbr.rel (%p311) target = $region36
      $region35: #{enhanced_color_attention.1} parent=11 // pred_region
        _
      $region36: #{enhanced_color_attention.1} parent=11 // pred_fallthru
        _
      // Predicated region
      $region37: #{enhanced_color_attention.1} parent=11 // pred_check
        %p314 = pneg %p204
      $region38: #{enhanced_color_attention.1} parent=11 // pred_check_branch
        %316 = sbr.rel (%p314) target = $region40
      $region39: #{enhanced_color_attention.1} parent=11 // pred_region
        _
      $region40: #{enhanced_color_attention.1} parent=11 // pred_fallthru
        _
      // Predicated region
      $region41: #{enhanced_color_attention.1} parent=11 // pred_check
        %p317 = pneg %p225
      $region42: #{enhanced_color_attention.1} parent=11 // pred_check_branch
        %319 = sbr.rel (%p317) target = $region44
      $region43: #{enhanced_color_attention.1} parent=11 // pred_region
        _
      $region44: #{enhanced_color_attention.1} parent=11 // pred_fallthru
        _
    $region12: #{enhanced_color_attention.1} parent=5 // pred_fallthru
      _
    %p320 = scmp.lt.s32.totalorder %s17, 2
    // Predicated region
    $region45: #{enhanced_color_attention.1} parent=5 // pred_check
      %p321 = pneg %p320
    $region46: #{enhanced_color_attention.1} parent=5 // pred_check_branch
      %323 = sbr.rel (%p321) target = $region48
    $region47: #{enhanced_color_attention.1} parent=5 // pred_region
      // Predicated region
      $region49: #{enhanced_color_attention.1} parent=47 // pred_check
        %p324 = pneg %p51
      $region50: #{enhanced_color_attention.1} parent=47 // pred_check_branch
        %326 = sbr.rel (%p324) target = $region52
      $region51: #{enhanced_color_attention.1} parent=47 // pred_region
        %s327 = smul.u32 2, %s25
        %p328 = scmp.lt.s32.totalorder %s24, 1
        %s329 = scalar_select %p328, %s24, 1
        %p330 = scmp.lt.s32.totalorder %s327, 1
        %s331 = scalar_select %p330, %s327, 1
        %s332 = smul.addr %s329, 2
        %s333 = sadd.s32 %s331, %s332
        %s334 = smul.addr %s333, 4
        %s335 = scalar_lea.vmem %s0, %s334
        %s336 = smul.u32 2, %s25
      $region52: #{enhanced_color_attention.1} parent=47 // pred_fallthru
        _
    $region48: #{enhanced_color_attention.1} parent=5 // pred_fallthru
      _
    %p337 = scmp.le.s32.totalorder 1, %s17
    %p338 = scmp.lt.s32.totalorder %s17, 3
    %p339 = pnand %p337, %p338
    %p340 = pneg %p339
    // Predicated region
    $region53: #{enhanced_color_attention.1} parent=5 // pred_check
      _
    $region54: #{enhanced_color_attention.1} parent=5 // pred_check_branch
      %342 = sbr.rel (%p339) target = $region56
    $region55: #{enhanced_color_attention.1} parent=5 // pred_region
      %s343 = ssub.s32 %s17, 1
      %s344 = smul.u32 2, %s27
      %p345 = scmp.lt.s32.totalorder %s26, 1
      %s346 = scalar_select %p345, %s26, 1
      %p347 = scmp.lt.s32.totalorder %s344, 1
      %s348 = scalar_select %p347, %s344, 1
      %s349 = smul.addr %s346, 2
      %s350 = sadd.s32 %s348, %s349
      %s351 = smul.addr %s350, 4
      %s352 = scalar_lea.vmem %s0, %s351
      %p353 = pneg %p57
      %p354 = pneg %p54
      %p355 = pneg %p78
      %p356 = pneg %p75
      %p357 = pneg %p99
      %p358 = pneg %p96
      %p359 = pneg %p120
      %p360 = pneg %p117
      %p361 = pneg %p141
      %p362 = pneg %p138
      %p363 = pneg %p162
      %p364 = pneg %p159
      %p365 = pneg %p183
      %p366 = pneg %p180
      %p367 = pneg %p204
      %p368 = pneg %p201
      %p369 = pneg %p225
      %p370 = pneg %p222
      %p371 = pneg %p253
      %p372 = pneg %p250
      %s373 = smul.u32 2, %s27
      %p374 = scmp.lt.s32.totalorder %s26, 1
      %s375 = scalar_select %p374, %s26, 1
      %p376 = scmp.lt.s32.totalorder %s373, 1
      %s377 = scalar_select %p376, %s373, 1
      %s378 = smul.addr %s375, 2
      %s379 = sadd.s32 %s377, %s378
      %s380 = smul.addr %s379, 4
      %s381 = scalar_lea.vmem %s9, %s380
      %p382 = pneg %p281
      %p383 = pneg %p278
      %s384 = smul.u32 2, %s27
      %p385 = scmp.lt.s32.totalorder %s26, 1
      %s386 = scalar_select %p385, %s26, 1
      %p387 = scmp.lt.s32.totalorder %s384, 1
      %s388 = scalar_select %p387, %s384, 1
      %s389 = smul.addr %s386, 2
      %s390 = sadd.s32 %s388, %s389
      %s391 = smul.addr %s390, 2
      %s392 = scalar_lea.vmem %s10, %s391
      %s393 = smul.u32 2, %s27
      %p394 = scmp.lt.s32.totalorder %s26, 1
      %s395 = scalar_select %p394, %s26, 1
      %p396 = scmp.lt.s32.totalorder %s393, 1
      %s397 = scalar_select %p396, %s393, 1
      %s398 = smul.addr %s395, 2
      %s399 = sadd.s32 %s397, %s398
      %s400 = smul.addr %s399, 4
      %s401 = scalar_lea.vmem %s0, %s400
      %s402 = smul.u32 2, %s27
      %s403 = smul.u32 2, %s27
      %p404 = scmp.lt.s32.totalorder %s26, 1
      %s405 = scalar_select %p404, %s26, 1
      %p406 = scmp.lt.s32.totalorder %s403, 1
      %s407 = scalar_select %p406, %s403, 1
      %s408 = smul.addr %s405, 2
      %s409 = sadd.s32 %s407, %s408
      %s410 = smul.addr %s409, 4
      %s411 = scalar_lea.vmem %s9, %s410
      %s412 = smul.u32 2, %s27
      %s413 = smul.u32 2, %s27
      %p414 = scmp.lt.s32.totalorder %s26, 1
      %s415 = scalar_select %p414, %s26, 1
      %p416 = scmp.lt.s32.totalorder %s413, 1
      %s417 = scalar_select %p416, %s413, 1
      %s418 = smul.addr %s415, 2
      %s419 = sadd.s32 %s417, %s418
      %s420 = smul.addr %s419, 2
      %s421 = scalar_lea.vmem %s10, %s420
      %s422 = smul.u32 2, %s27
      %v424 = vld [vmem:[%s401] sm:$0xff]
      %v425 = vld [vmem:[%s1] sm:$0xf]
      %v426 = vld [vmem:[%s1 + $0x4] sm:$0xf]
      %v427 = vld [vmem:[%s1 + $0x8] sm:$0xf]
      %v428 = vld [vmem:[%s1 + $0xc] sm:$0xf]
      %v429 = vld [vmem:[%s1 + $0x10] sm:$0xf]
      %v430 = vld [vmem:[%s1 + $0x14] sm:$0xf]
      %v431 = vld [vmem:[%s1 + $0x18] sm:$0xf]
      %v432 = vld [vmem:[%s1 + $0x1c] sm:$0xf]
      %v433 = vld [vmem:[%s1 + $0x20] sm:$0xf]
      %v434 = vld [vmem:[%s1 + $0x24] sm:$0xf]
      %v435 = vld [vmem:[%s1 + $0x28] sm:$0xf]
      %v436 = vld [vmem:[%s1 + $0x2c] sm:$0xf]
      %v437 = vld [vmem:[%s1 + $0x30] sm:$0xf]
      %v438 = vld [vmem:[%s1 + $0x34] sm:$0xf]
      %v439 = vld [vmem:[%s1 + $0x38] sm:$0xf]
      %v440 = vld [vmem:[%s1 + $0x3c] sm:$0xf]
      %v442 = vcombine.high %v424, %v424
      %v444 = vpack.c.bf16 %v424, %v424
      %v445 = vpack.c.bf16 %v442, %v442
      %v446 = vld [vmem:[%s2] sm:$0xff]
      %v447 = vld [vmem:[%s2 + $0x8] sm:$0xff]
      %v448 = vld [vmem:[%s2 + $0x10] sm:$0xff]
      %v449 = vld [vmem:[%s2 + $0x18] sm:$0xff]
      %v450 = vld [vmem:[%s2 + $0x20] sm:$0xff]
      %v451 = vld [vmem:[%s2 + $0x28] sm:$0xff]
      %v452 = vld [vmem:[%s2 + $0x30] sm:$0xff]
      %v453 = vld [vmem:[%s2 + $0x38] sm:$0xff]
      %v454 = vld [vmem:[%s2 + $0x40] sm:$0xff]
      %v455 = vld [vmem:[%s2 + $0x48] sm:$0xff]
      %v456 = vld [vmem:[%s2 + $0x50] sm:$0xff]
      %v457 = vld [vmem:[%s2 + $0x58] sm:$0xff]
      %v458 = vld [vmem:[%s2 + $0x60] sm:$0xff]
      %v459 = vld [vmem:[%s2 + $0x68] sm:$0xff]
      %v460 = vld [vmem:[%s2 + $0x70] sm:$0xff]
      %v461 = vld [vmem:[%s2 + $0x78] sm:$0xff]
      %463 = vset.pattern.permute.xlu0 0
      %464 = vperm.xlu0 %463, %v446
      %v465 = vpop.permute.xlu0 %464
      %468 = vset.pattern.permute.xlu0 0
      %469 = vperm.xlu0 %468, %v447
      %v470 = vpop.permute.xlu0 %469
      %473 = vset.pattern.permute.xlu0 0
      %474 = vperm.xlu0 %473, %v448
      %v475 = vpop.permute.xlu0 %474
      %478 = vset.pattern.permute.xlu0 0
      %479 = vperm.xlu0 %478, %v449
      %v480 = vpop.permute.xlu0 %479
      %483 = vset.pattern.permute.xlu0 0
      %484 = vperm.xlu0 %483, %v450
      %v485 = vpop.permute.xlu0 %484
      %488 = vset.pattern.permute.xlu0 0
      %489 = vperm.xlu0 %488, %v451
      %v490 = vpop.permute.xlu0 %489
      %493 = vset.pattern.permute.xlu0 0
      %494 = vperm.xlu0 %493, %v452
      %v495 = vpop.permute.xlu0 %494
      %498 = vset.pattern.permute.xlu0 0
      %499 = vperm.xlu0 %498, %v453
      %v500 = vpop.permute.xlu0 %499
      %503 = vset.pattern.permute.xlu0 0
      %504 = vperm.xlu0 %503, %v454
      %v505 = vpop.permute.xlu0 %504
      %508 = vset.pattern.permute.xlu0 0
      %509 = vperm.xlu0 %508, %v455
      %v510 = vpop.permute.xlu0 %509
      %513 = vset.pattern.permute.xlu0 0
      %514 = vperm.xlu0 %513, %v456
      %v515 = vpop.permute.xlu0 %514
      %518 = vset.pattern.permute.xlu0 0
      %519 = vperm.xlu0 %518, %v457
      %v520 = vpop.permute.xlu0 %519
      %523 = vset.pattern.permute.xlu0 0
      %524 = vperm.xlu0 %523, %v458
      %v525 = vpop.permute.xlu0 %524
      %528 = vset.pattern.permute.xlu0 0
      %529 = vperm.xlu0 %528, %v459
      %v530 = vpop.permute.xlu0 %529
      %533 = vset.pattern.permute.xlu0 0
      %534 = vperm.xlu0 %533, %v460
      %v535 = vpop.permute.xlu0 %534
      %538 = vset.pattern.permute.xlu0 0
      %539 = vperm.xlu0 %538, %v461
      %v540 = vpop.permute.xlu0 %539
      %v558 = vunpack.c.l.b16 %v425
      %v559 = vunpack.c.l.b16 %v426
      %v560 = vunpack.c.l.b16 %v427
      %v561 = vunpack.c.l.b16 %v428
      %v562 = vunpack.c.l.b16 %v429
      %v563 = vunpack.c.l.b16 %v430
      %v564 = vunpack.c.l.b16 %v431
      %v565 = vunpack.c.l.b16 %v432
      %v566 = vunpack.c.l.b16 %v433
      %v567 = vunpack.c.l.b16 %v434
      %v568 = vunpack.c.l.b16 %v435
      %v569 = vunpack.c.l.b16 %v436
      %v570 = vunpack.c.l.b16 %v437
      %v571 = vunpack.c.l.b16 %v438
      %v572 = vunpack.c.l.b16 %v439
      %v573 = vunpack.c.l.b16 %v440
      %v574 = vpack.c.b16 %v559, %v558
      %v575 = vpack.c.b16 %v561, %v560
      %v576 = vpack.c.b16 %v563, %v562
      %v577 = vpack.c.b16 %v565, %v564
      %v578 = vpack.c.b16 %v567, %v566
      %v579 = vpack.c.b16 %v569, %v568
      %v580 = vpack.c.b16 %v571, %v570
      %v581 = vpack.c.b16 %v573, %v572
      %vm582 = vcmask 31744
      %v584 = vsel %vm582, %v574, 0
      %v587 = vsel %vm582, %v575, 0
      %v590 = vsel %vm582, %v576, 0
      %v593 = vsel %vm582, %v577, 0
      %v596 = vsel %vm582, %v578, 0
      %v599 = vsel %vm582, %v579, 0
      %v602 = vsel %vm582, %v580, 0
      %v605 = vsel %vm582, %v581, 0
      %vm607 = vcmask 1041408
      %v609 = vsel %vm607, %v444, 0
      %v612 = vsel %vm607, %v445, 0
      %614 = vmatprep.subr.bf16.mxu0 0
      %615 = vmatpush1.bf16.msra.mxu0 0
      %616 = vmatprep.subr.bf16.mxu0 0
      %617 = vmatpush1.bf16.msra.mxu0 0
      %618 = vmatprep.subr.bf16.mxu0 0
      %619 = vmatpush1.bf16.msra.mxu0 0
      %620 = vmatprep.subr.bf16.mxu0 0
      %621 = vmatpush1.bf16.msra.mxu0 0
      %622 = vmatprep.subr.bf16.mxu0 0
      %623 = vmatpush1.bf16.msra.mxu0 0
      %624 = vmatprep.subr.bf16.mxu0 0
      %625 = vmatpush1.bf16.msra.mxu0 0
      %626 = vmatprep.subr.bf16.mxu0 0
      %627 = vmatpush1.bf16.msra.mxu0 0
      %628 = vmatprep.subr.bf16.mxu0 %v612
      %629 = vmatpush1.bf16.msra.mxu0 %v609
      %630 = vmatprep.subr.bf16.mxu0 0
      %631 = vmatpush2.bf16.msra.mxu0 0
      %632 = vmatprep.subr.bf16.mxu0 0
      %633 = vmatpush2.bf16.msra.mxu0 0
      %634 = vmatprep.subr.bf16.mxu0 0
      %635 = vmatpush2.bf16.msra.mxu0 0
      %636 = vmatprep.subr.bf16.mxu0 0
      %637 = vmatpush2.bf16.msra.mxu0 0
      %638 = vmatprep.subr.bf16.mxu0 0
      %639 = vmatpush2.bf16.msra.mxu0 0
      %640 = vmatprep.subr.bf16.mxu0 0
      %641 = vmatpush2.bf16.msra.mxu0 0
      %642 = vmatprep.subr.bf16.mxu0 0
      %643 = vmatpush2.bf16.msra.mxu0 0
      %644 = vmatprep.subr.bf16.mxu0 0
      %645 = vmatpush2.bf16.msra.mxu0 0
      %646 = vmatprep.mubr.bf16.mxu0 0
      %647 = vmatmul.mubr.bf16.gmra.mxu0 %v584
      %v648 = vpop.f32.mrf.mxu0
      %v649 = vadd.f32 %v465, %v648
      %v650 = vpop.f32.mrf.mxu0
      %v651 = vadd.f32 %v465, %v650
      %v652 = vpop.f32.mrf.mxu0
      %v653 = vadd.f32 %v470, %v652
      %v654 = vpop.f32.mrf.mxu0
      %v655 = vadd.f32 %v470, %v654
      %656 = vmatprep.mubr.bf16.mxu0 0
      %657 = vmatmul.mubr.bf16.gmra.mxu0 %v587
      %v658 = vpop.f32.mrf.mxu0
      %v659 = vadd.f32 %v475, %v658
      %v660 = vpop.f32.mrf.mxu0
      %v661 = vadd.f32 %v475, %v660
      %v662 = vpop.f32.mrf.mxu0
      %v663 = vadd.f32 %v480, %v662
      %v664 = vpop.f32.mrf.mxu0
      %v665 = vadd.f32 %v480, %v664
      %666 = vmatprep.mubr.bf16.mxu0 0
      %667 = vmatmul.mubr.bf16.gmra.mxu0 %v590
      %v668 = vpop.f32.mrf.mxu0
      %v669 = vadd.f32 %v485, %v668
      %v670 = vpop.f32.mrf.mxu0
      %v671 = vadd.f32 %v485, %v670
      %v672 = vpop.f32.mrf.mxu0
      %v673 = vadd.f32 %v490, %v672
      %v674 = vpop.f32.mrf.mxu0
      %v675 = vadd.f32 %v490, %v674
      %676 = vmatprep.mubr.bf16.mxu0 0
      %677 = vmatmul.mubr.bf16.gmra.mxu0 %v593
      %v678 = vpop.f32.mrf.mxu0
      %v679 = vadd.f32 %v495, %v678
      %v680 = vpop.f32.mrf.mxu0
      %v681 = vadd.f32 %v495, %v680
      %v682 = vpop.f32.mrf.mxu0
      %v683 = vadd.f32 %v500, %v682
      %v684 = vpop.f32.mrf.mxu0
      %v685 = vadd.f32 %v500, %v684
      %686 = vmatprep.mubr.bf16.mxu0 0
      %687 = vmatmul.mubr.bf16.gmra.mxu0 %v596
      %v688 = vpop.f32.mrf.mxu0
      %v689 = vadd.f32 %v505, %v688
      %v690 = vpop.f32.mrf.mxu0
      %v691 = vadd.f32 %v505, %v690
      %v692 = vpop.f32.mrf.mxu0
      %v693 = vadd.f32 %v510, %v692
      %v694 = vpop.f32.mrf.mxu0
      %v695 = vadd.f32 %v510, %v694
      %696 = vmatprep.mubr.bf16.mxu0 0
      %697 = vmatmul.mubr.bf16.gmra.mxu0 %v599
      %v698 = vpop.f32.mrf.mxu0
      %v699 = vadd.f32 %v515, %v698
      %v700 = vpop.f32.mrf.mxu0
      %v701 = vadd.f32 %v515, %v700
      %v702 = vpop.f32.mrf.mxu0
      %v703 = vadd.f32 %v520, %v702
      %v704 = vpop.f32.mrf.mxu0
      %v705 = vadd.f32 %v520, %v704
      %706 = vmatprep.mubr.bf16.mxu0 0
      %707 = vmatmul.mubr.bf16.gmra.mxu0 %v602
      %v708 = vpop.f32.mrf.mxu0
      %v709 = vadd.f32 %v525, %v708
      %v710 = vpop.f32.mrf.mxu0
      %v711 = vadd.f32 %v525, %v710
      %v712 = vpop.f32.mrf.mxu0
      %v713 = vadd.f32 %v530, %v712
      %v714 = vpop.f32.mrf.mxu0
      %v715 = vadd.f32 %v530, %v714
      %716 = vmatprep.mubr.bf16.mxu0 0
      %717 = vmatmul.mubr.bf16.gmra.mxu0 %v605
      %v718 = vpop.f32.mrf.mxu0
      %v719 = vadd.f32 %v535, %v718
      %v720 = vpop.f32.mrf.mxu0
      %v721 = vadd.f32 %v535, %v720
      %v722 = vpop.f32.mrf.mxu0
      %v723 = vadd.f32 %v540, %v722
      %v724 = vpop.f32.mrf.mxu0
      %v725 = vadd.f32 %v540, %v724
      %726 = vdwg.mxu0
      %v727 = vmax.f32 %v649, 0.0
      %v728 = vmax.f32 %v651, 0.0
      %v729 = vmax.f32 %v653, 0.0
      %v730 = vmax.f32 %v655, 0.0
      %v731 = vmax.f32 %v659, 0.0
      %v732 = vmax.f32 %v661, 0.0
      %v733 = vmax.f32 %v663, 0.0
      %v734 = vmax.f32 %v665, 0.0
      %v735 = vmax.f32 %v669, 0.0
      %v736 = vmax.f32 %v671, 0.0
      %v737 = vmax.f32 %v673, 0.0
      %v738 = vmax.f32 %v675, 0.0
      %v739 = vmax.f32 %v679, 0.0
      %v740 = vmax.f32 %v681, 0.0
      %v741 = vmax.f32 %v683, 0.0
      %v742 = vmax.f32 %v685, 0.0
      %v743 = vmax.f32 %v689, 0.0
      %v744 = vmax.f32 %v691, 0.0
      %v745 = vmax.f32 %v693, 0.0
      %v746 = vmax.f32 %v695, 0.0
      %v747 = vmax.f32 %v699, 0.0
      %v748 = vmax.f32 %v701, 0.0
      %v749 = vmax.f32 %v703, 0.0
      %v750 = vmax.f32 %v705, 0.0
      %v751 = vmax.f32 %v709, 0.0
      %v752 = vmax.f32 %v711, 0.0
      %v753 = vmax.f32 %v713, 0.0
      %v754 = vmax.f32 %v715, 0.0
      %v755 = vmax.f32 %v719, 0.0
      %v756 = vmax.f32 %v721, 0.0
      %v757 = vmax.f32 %v723, 0.0
      %v758 = vmax.f32 %v725, 0.0
      %v759 = vpack.c.bf16 %v729, %v727
      %v760 = vpack.c.bf16 %v730, %v728
      %v761 = vpack.c.bf16 %v733, %v731
      %v762 = vpack.c.bf16 %v734, %v732
      %v763 = vpack.c.bf16 %v737, %v735
      %v764 = vpack.c.bf16 %v738, %v736
      %v765 = vpack.c.bf16 %v741, %v739
      %v766 = vpack.c.bf16 %v742, %v740
      %v767 = vpack.c.bf16 %v745, %v743
      %v768 = vpack.c.bf16 %v746, %v744
      %v769 = vpack.c.bf16 %v749, %v747
      %v770 = vpack.c.bf16 %v750, %v748
      %v771 = vpack.c.bf16 %v753, %v751
      %v772 = vpack.c.bf16 %v754, %v752
      %v773 = vpack.c.bf16 %v757, %v755
      %v774 = vpack.c.bf16 %v758, %v756
      %v775 = vld [vmem:[%s3] sm:$0xf]
      %v776 = vld [vmem:[%s3 + $0x4] sm:$0xf]
      %v777 = vld [vmem:[%s3 + $0x8] sm:$0xf]
      %v778 = vld [vmem:[%s3 + $0xc] sm:$0xf]
      %v779 = vld [vmem:[%s3 + $0x10] sm:$0xf]
      %v780 = vld [vmem:[%s3 + $0x14] sm:$0xf]
      %v781 = vld [vmem:[%s3 + $0x18] sm:$0xf]
      %v782 = vld [vmem:[%s3 + $0x1c] sm:$0xf]
      %v783 = vld [vmem:[%s4] sm:$0xff]
      %v784 = vld [vmem:[%s4 + $0x8] sm:$0xff]
      %v785 = vld [vmem:[%s4 + $0x10] sm:$0xff]
      %v786 = vld [vmem:[%s4 + $0x18] sm:$0xff]
      %v787 = vld [vmem:[%s4 + $0x20] sm:$0xff]
      %v788 = vld [vmem:[%s4 + $0x28] sm:$0xff]
      %v789 = vld [vmem:[%s4 + $0x30] sm:$0xff]
      %v790 = vld [vmem:[%s4 + $0x38] sm:$0xff]
      %792 = vset.pattern.permute.xlu0 0
      %793 = vperm.xlu0 %792, %v783
      %v794 = vpop.permute.xlu0 %793
      %797 = vset.pattern.permute.xlu0 0
      %798 = vperm.xlu0 %797, %v784
      %v799 = vpop.permute.xlu0 %798
      %802 = vset.pattern.permute.xlu0 0
      %803 = vperm.xlu0 %802, %v785
      %v804 = vpop.permute.xlu0 %803
      %807 = vset.pattern.permute.xlu0 0
      %808 = vperm.xlu0 %807, %v786
      %v809 = vpop.permute.xlu0 %808
      %812 = vset.pattern.permute.xlu0 0
      %813 = vperm.xlu0 %812, %v787
      %v814 = vpop.permute.xlu0 %813
      %817 = vset.pattern.permute.xlu0 0
      %818 = vperm.xlu0 %817, %v788
      %v819 = vpop.permute.xlu0 %818
      %822 = vset.pattern.permute.xlu0 0
      %823 = vperm.xlu0 %822, %v789
      %v824 = vpop.permute.xlu0 %823
      %827 = vset.pattern.permute.xlu0 0
      %828 = vperm.xlu0 %827, %v790
      %v829 = vpop.permute.xlu0 %828
      %v839 = vunpack.c.l.b16 %v775
      %v840 = vunpack.c.l.b16 %v776
      %v841 = vunpack.c.l.b16 %v777
      %v842 = vunpack.c.l.b16 %v778
      %v843 = vunpack.c.l.b16 %v779
      %v844 = vunpack.c.l.b16 %v780
      %v845 = vunpack.c.l.b16 %v781
      %v846 = vunpack.c.l.b16 %v782
      %v847 = vpack.c.b16 %v840, %v839
      %v848 = vpack.c.b16 %v842, %v841
      %v849 = vpack.c.b16 %v844, %v843
      %v850 = vpack.c.b16 %v846, %v845
      %855 = vmatprep.subr.bf16.mxu0 %v774
      %856 = vmatpush1.bf16.msra.mxu0 %v773
      %857 = vmatprep.subr.bf16.mxu0 %v772
      %858 = vmatpush1.bf16.msra.mxu0 %v771
      %859 = vmatprep.subr.bf16.mxu0 %v770
      %860 = vmatpush1.bf16.msra.mxu0 %v769
      %861 = vmatprep.subr.bf16.mxu0 %v768
      %862 = vmatpush1.bf16.msra.mxu0 %v767
      %863 = vmatprep.subr.bf16.mxu0 %v766
      %864 = vmatpush1.bf16.msra.mxu0 %v765
      %865 = vmatprep.subr.bf16.mxu0 %v764
      %866 = vmatpush1.bf16.msra.mxu0 %v763
      %867 = vmatprep.subr.bf16.mxu0 %v762
      %868 = vmatpush1.bf16.msra.mxu0 %v761
      %869 = vmatprep.subr.bf16.mxu0 %v760
      %870 = vmatpush1.bf16.msra.mxu0 %v759
      %871 = vmatprep.subr.bf16.mxu0 0
      %872 = vmatpush2.bf16.msra.mxu0 0
      %873 = vmatprep.subr.bf16.mxu0 0
      %874 = vmatpush2.bf16.msra.mxu0 0
      %875 = vmatprep.subr.bf16.mxu0 0
      %876 = vmatpush2.bf16.msra.mxu0 0
      %877 = vmatprep.subr.bf16.mxu0 0
      %878 = vmatpush2.bf16.msra.mxu0 0
      %879 = vmatprep.subr.bf16.mxu0 0
      %880 = vmatpush2.bf16.msra.mxu0 0
      %881 = vmatprep.subr.bf16.mxu0 0
      %882 = vmatpush2.bf16.msra.mxu0 0
      %883 = vmatprep.subr.bf16.mxu0 0
      %884 = vmatpush2.bf16.msra.mxu0 0
      %885 = vmatprep.subr.bf16.mxu0 0
      %886 = vmatpush2.bf16.msra.mxu0 0
      %887 = vmatprep.mubr.bf16.mxu0 0
      %888 = vmatmul.mubr.bf16.gmra.mxu0 %v847
      %v889 = vpop.f32.mrf.mxu0
      %v890 = vadd.f32 %v794, %v889
      %v891 = vpop.f32.mrf.mxu0
      %v892 = vadd.f32 %v794, %v891
      %v893 = vpop.f32.mrf.mxu0
      %v894 = vadd.f32 %v799, %v893
      %v895 = vpop.f32.mrf.mxu0
      %v896 = vadd.f32 %v799, %v895
      %897 = vmatprep.mubr.bf16.mxu0 0
      %898 = vmatmul.mubr.bf16.gmra.mxu0 %v848
      %v899 = vpop.f32.mrf.mxu0
      %v900 = vadd.f32 %v804, %v899
      %v901 = vpop.f32.mrf.mxu0
      %v902 = vadd.f32 %v804, %v901
      %v903 = vpop.f32.mrf.mxu0
      %v904 = vadd.f32 %v809, %v903
      %v905 = vpop.f32.mrf.mxu0
      %v906 = vadd.f32 %v809, %v905
      %907 = vmatprep.mubr.bf16.mxu0 0
      %908 = vmatmul.mubr.bf16.gmra.mxu0 %v849
      %v909 = vpop.f32.mrf.mxu0
      %v910 = vadd.f32 %v814, %v909
      %v911 = vpop.f32.mrf.mxu0
      %v912 = vadd.f32 %v814, %v911
      %v913 = vpop.f32.mrf.mxu0
      %v914 = vadd.f32 %v819, %v913
      %v915 = vpop.f32.mrf.mxu0
      %v916 = vadd.f32 %v819, %v915
      %917 = vmatprep.mubr.bf16.mxu0 0
      %918 = vmatmul.mubr.bf16.gmra.mxu0 %v850
      %v919 = vpop.f32.mrf.mxu0
      %v920 = vadd.f32 %v824, %v919
      %v921 = vpop.f32.mrf.mxu0
      %v922 = vadd.f32 %v824, %v921
      %v923 = vpop.f32.mrf.mxu0
      %v924 = vadd.f32 %v829, %v923
      %v925 = vpop.f32.mrf.mxu0
      %v926 = vadd.f32 %v829, %v925
      %927 = vdwg.mxu0
      %v928 = vmax.f32 %v890, 0.0
      %v929 = vmax.f32 %v892, 0.0
      %v930 = vmax.f32 %v894, 0.0
      %v931 = vmax.f32 %v896, 0.0
      %v932 = vmax.f32 %v900, 0.0
      %v933 = vmax.f32 %v902, 0.0
      %v934 = vmax.f32 %v904, 0.0
      %v935 = vmax.f32 %v906, 0.0
      %v936 = vmax.f32 %v910, 0.0
      %v937 = vmax.f32 %v912, 0.0
      %v938 = vmax.f32 %v914, 0.0
      %v939 = vmax.f32 %v916, 0.0
      %v940 = vmax.f32 %v920, 0.0
      %v941 = vmax.f32 %v922, 0.0
      %v942 = vmax.f32 %v924, 0.0
      %v943 = vmax.f32 %v926, 0.0
      %v944 = vpack.c.bf16 %v930, %v928
      %v945 = vpack.c.bf16 %v931, %v929
      %v946 = vpack.c.bf16 %v934, %v932
      %v947 = vpack.c.bf16 %v935, %v933
      %v948 = vpack.c.bf16 %v938, %v936
      %v949 = vpack.c.bf16 %v939, %v937
      %v950 = vpack.c.bf16 %v942, %v940
      %v951 = vpack.c.bf16 %v943, %v941
      %v952 = vld [vmem:[%s5] sm:$0xf]
      %v953 = vld [vmem:[%s5 + $0x4] sm:$0xf]
      %v954 = vld [vmem:[%s5 + $0x8] sm:$0xf]
      %v955 = vld [vmem:[%s5 + $0xc] sm:$0xf]
      %v956 = vld [vmem:[%s5 + $0x10] sm:$0xf]
      %v957 = vld [vmem:[%s5 + $0x14] sm:$0xf]
      %v958 = vld [vmem:[%s5 + $0x18] sm:$0xf]
      %v959 = vld [vmem:[%s5 + $0x1c] sm:$0xf]
      %v960 = vld [vmem:[%s5 + $0x20] sm:$0xf]
      %v961 = vld [vmem:[%s6] sm:$0xff]
      %v962 = vld [vmem:[%s6 + $0x8] sm:$0xff]
      %v963 = vld [vmem:[%s6 + $0x10] sm:$0xff]
      %v964 = vld [vmem:[%s6 + $0x18] sm:$0xff]
      %v965 = vld [vmem:[%s6 + $0x20] sm:$0xff]
      %v966 = vld [vmem:[%s6 + $0x28] sm:$0xff]
      %v967 = vld [vmem:[%s6 + $0x30] sm:$0xff]
      %v968 = vld [vmem:[%s6 + $0x38] sm:$0xff]
      %v969 = vld [vmem:[%s6 + $0x40] sm:$0xff]
      %971 = vset.pattern.permute.xlu0 0
      %972 = vperm.xlu0 %971, %v961
      %v973 = vpop.permute.xlu0 %972
      %976 = vset.pattern.permute.xlu0 0
      %977 = vperm.xlu0 %976, %v962
      %v978 = vpop.permute.xlu0 %977
      %981 = vset.pattern.permute.xlu0 0
      %982 = vperm.xlu0 %981, %v963
      %v983 = vpop.permute.xlu0 %982
      %986 = vset.pattern.permute.xlu0 0
      %987 = vperm.xlu0 %986, %v964
      %v988 = vpop.permute.xlu0 %987
      %991 = vset.pattern.permute.xlu0 0
      %992 = vperm.xlu0 %991, %v965
      %v993 = vpop.permute.xlu0 %992
      %996 = vset.pattern.permute.xlu0 0
      %997 = vperm.xlu0 %996, %v966
      %v998 = vpop.permute.xlu0 %997
      %1001 = vset.pattern.permute.xlu0 0
      %1002 = vperm.xlu0 %1001, %v967
      %v1003 = vpop.permute.xlu0 %1002
      %1006 = vset.pattern.permute.xlu0 0
      %1007 = vperm.xlu0 %1006, %v968
      %v1008 = vpop.permute.xlu0 %1007
      %1011 = vset.pattern.permute.xlu0 0
      %1012 = vperm.xlu0 %1011, %v969
      %v1013 = vpop.permute.xlu0 %1012
      %v1024 = vunpack.c.l.b16 %v952
      %v1025 = vunpack.c.l.b16 %v953
      %v1026 = vunpack.c.l.b16 %v954
      %v1027 = vunpack.c.l.b16 %v955
      %v1028 = vunpack.c.l.b16 %v956
      %v1029 = vunpack.c.l.b16 %v957
      %v1030 = vunpack.c.l.b16 %v958
      %v1031 = vunpack.c.l.b16 %v959
      %v1032 = vunpack.c.l.b16 %v960
      %v1033 = vpack.c.b16 %v1025, %v1024
      %v1034 = vpack.c.b16 %v1027, %v1026
      %v1035 = vpack.c.b16 %v1029, %v1028
      %v1036 = vpack.c.b16 %v1031, %v1030
      %v1037 = vpack.c.b16 %v1032, %v1032
      %vm1038 = vcmask 523264
      %v1040 = vsel %vm1038, %v1033, 0
      %v1043 = vsel %vm1038, %v1034, 0
      %v1046 = vsel %vm1038, %v1035, 0
      %v1049 = vsel %vm1038, %v1036, 0
      %v1052 = vsel %vm1038, %v1037, 0
      %1054 = vmatprep.subr.bf16.mxu0 0
      %1055 = vmatpush1.bf16.msra.mxu0 0
      %1056 = vmatprep.subr.bf16.mxu0 0
      %1057 = vmatpush1.bf16.msra.mxu0 0
      %1058 = vmatprep.subr.bf16.mxu0 0
      %1059 = vmatpush1.bf16.msra.mxu0 0
      %1060 = vmatprep.subr.bf16.mxu0 0
      %1061 = vmatpush1.bf16.msra.mxu0 0
      %1062 = vmatprep.subr.bf16.mxu0 %v951
      %1063 = vmatpush1.bf16.msra.mxu0 %v950
      %1064 = vmatprep.subr.bf16.mxu0 %v949
      %1065 = vmatpush1.bf16.msra.mxu0 %v948
      %1066 = vmatprep.subr.bf16.mxu0 %v947
      %1067 = vmatpush1.bf16.msra.mxu0 %v946
      %1068 = vmatprep.subr.bf16.mxu0 %v945
      %1069 = vmatpush1.bf16.msra.mxu0 %v944
      %1070 = vmatprep.subr.bf16.mxu0 0
      %1071 = vmatpush2.bf16.msra.mxu0 0
      %1072 = vmatprep.subr.bf16.mxu0 0
      %1073 = vmatpush2.bf16.msra.mxu0 0
      %1074 = vmatprep.subr.bf16.mxu0 0
      %1075 = vmatpush2.bf16.msra.mxu0 0
      %1076 = vmatprep.subr.bf16.mxu0 0
      %1077 = vmatpush2.bf16.msra.mxu0 0
      %1078 = vmatprep.subr.bf16.mxu0 0
      %1079 = vmatpush2.bf16.msra.mxu0 0
      %1080 = vmatprep.subr.bf16.mxu0 0
      %1081 = vmatpush2.bf16.msra.mxu0 0
      %1082 = vmatprep.subr.bf16.mxu0 0
      %1083 = vmatpush2.bf16.msra.mxu0 0
      %1084 = vmatprep.subr.bf16.mxu0 0
      %1085 = vmatpush2.bf16.msra.mxu0 0
      %1086 = vmatprep.mubr.bf16.mxu0 0
      %1087 = vmatmul.mubr.bf16.gmra.mxu0 %v1040
      %v1088 = vpop.f32.mrf.mxu0
      %v1089 = vadd.f32 %v973, %v1088
      %v1090 = vpop.f32.mrf.mxu0
      %v1091 = vadd.f32 %v973, %v1090
      %v1092 = vpop.f32.mrf.mxu0
      %v1093 = vadd.f32 %v978, %v1092
      %v1094 = vpop.f32.mrf.mxu0
      %v1095 = vadd.f32 %v978, %v1094
      %1096 = vmatprep.mubr.bf16.mxu0 0
      %1097 = vmatmul.mubr.bf16.gmra.mxu0 %v1043
      %v1098 = vpop.f32.mrf.mxu0
      %v1099 = vadd.f32 %v983, %v1098
      %v1100 = vpop.f32.mrf.mxu0
      %v1101 = vadd.f32 %v983, %v1100
      %v1102 = vpop.f32.mrf.mxu0
      %v1103 = vadd.f32 %v988, %v1102
      %v1104 = vpop.f32.mrf.mxu0
      %v1105 = vadd.f32 %v988, %v1104
      %1106 = vmatprep.mubr.bf16.mxu0 0
      %1107 = vmatmul.mubr.bf16.gmra.mxu0 %v1046
      %v1108 = vpop.f32.mrf.mxu0
      %v1109 = vadd.f32 %v993, %v1108
      %v1110 = vpop.f32.mrf.mxu0
      %v1111 = vadd.f32 %v993, %v1110
      %v1112 = vpop.f32.mrf.mxu0
      %v1113 = vadd.f32 %v998, %v1112
      %v1114 = vpop.f32.mrf.mxu0
      %v1115 = vadd.f32 %v998, %v1114
      %1116 = vmatprep.mubr.bf16.mxu0 0
      %1117 = vmatmul.mubr.bf16.gmra.mxu0 %v1049
      %v1118 = vpop.f32.mrf.mxu0
      %v1119 = vadd.f32 %v1003, %v1118
      %v1120 = vpop.f32.mrf.mxu0
      %v1121 = vadd.f32 %v1003, %v1120
      %v1122 = vpop.f32.mrf.mxu0
      %v1123 = vadd.f32 %v1008, %v1122
      %v1124 = vpop.f32.mrf.mxu0
      %v1125 = vadd.f32 %v1008, %v1124
      %1126 = vmatprep.mubr.bf16.mxu0 0
      %1127 = vmatmul.mubr.bf16.gmra.mxu0 %v1052
      %v1128 = vpop.f32.mrf.mxu0
      %v1129 = vadd.f32 %v1013, %v1128
      %v1130 = vpop.f32.mrf.mxu0
      %v1131 = vadd.f32 %v1013, %v1130
      %v1132 = vpop.f32.mrf.mxu0
      %v1133 = vpop.f32.mrf.mxu0
      %1134 = vdwg.mxu0
      %v1135 = vmax.f32 %v1089, 0.0
      %v1136 = vmax.f32 %v1091, 0.0
      %v1137 = vmax.f32 %v1093, 0.0
      %v1138 = vmax.f32 %v1095, 0.0
      %v1139 = vmax.f32 %v1099, 0.0
      %v1140 = vmax.f32 %v1101, 0.0
      %v1141 = vmax.f32 %v1103, 0.0
      %v1142 = vmax.f32 %v1105, 0.0
      %v1143 = vmax.f32 %v1109, 0.0
      %v1144 = vmax.f32 %v1111, 0.0
      %v1145 = vmax.f32 %v1113, 0.0
      %v1146 = vmax.f32 %v1115, 0.0
      %v1147 = vmax.f32 %v1119, 0.0
      %v1148 = vmax.f32 %v1121, 0.0
      %v1149 = vmax.f32 %v1123, 0.0
      %v1150 = vmax.f32 %v1125, 0.0
      %v1151 = vld [vmem:[%s7] sm:$0xff]
      %v1152 = vld [vmem:[%s7 + $0x8] sm:$0xff]
      %v1153 = vld [vmem:[%s7 + $0x10] sm:$0xff]
      %v1154 = vld [vmem:[%s7 + $0x18] sm:$0xff]
      %v1155 = vld [vmem:[%s7 + $0x20] sm:$0xff]
      %v1156 = vld [vmem:[%s7 + $0x28] sm:$0xff]
      %v1157 = vld [vmem:[%s7 + $0x30] sm:$0xff]
      %v1158 = vld [vmem:[%s7 + $0x38] sm:$0xff]
      %1160 = vset.pattern.permute.xlu0 0
      %1161 = vperm.xlu0 %1160, %v1151
      %v1162 = vpop.permute.xlu0 %1161
      %1165 = vset.pattern.permute.xlu0 0
      %1166 = vperm.xlu0 %1165, %v1152
      %v1167 = vpop.permute.xlu0 %1166
      %1170 = vset.pattern.permute.xlu0 0
      %1171 = vperm.xlu0 %1170, %v1153
      %v1172 = vpop.permute.xlu0 %1171
      %1175 = vset.pattern.permute.xlu0 0
      %1176 = vperm.xlu0 %1175, %v1154
      %v1177 = vpop.permute.xlu0 %1176
      %1180 = vset.pattern.permute.xlu0 0
      %1181 = vperm.xlu0 %1180, %v1155
      %v1182 = vpop.permute.xlu0 %1181
      %1185 = vset.pattern.permute.xlu0 0
      %1186 = vperm.xlu0 %1185, %v1156
      %v1187 = vpop.permute.xlu0 %1186
      %1190 = vset.pattern.permute.xlu0 0
      %1191 = vperm.xlu0 %1190, %v1157
      %v1192 = vpop.permute.xlu0 %1191
      %1195 = vset.pattern.permute.xlu0 0
      %1196 = vperm.xlu0 %1195, %v1158
      %v1197 = vpop.permute.xlu0 %1196
      %v1199 = vmul.f32 %v1135, %v1162
      %v1200 = vmul.f32 %v1136, %v1162
      %v1201 = vmul.f32 %v1137, %v1167
      %v1202 = vmul.f32 %v1138, %v1167
      %v1203 = vmul.f32 %v1139, %v1172
      %v1204 = vmul.f32 %v1140, %v1172
      %v1205 = vmul.f32 %v1141, %v1177
      %v1206 = vmul.f32 %v1142, %v1177
      %v1207 = vmul.f32 %v1143, %v1182
      %v1208 = vmul.f32 %v1144, %v1182
      %v1209 = vmul.f32 %v1145, %v1187
      %v1210 = vmul.f32 %v1146, %v1187
      %v1211 = vmul.f32 %v1147, %v1192
      %v1212 = vmul.f32 %v1148, %v1192
      %v1213 = vmul.f32 %v1149, %v1197
      %v1214 = vmul.f32 %v1150, %v1197
      %v1215 = vadd.f32 %v1199, %v1201
      %v1216 = vadd.f32 %v1215, %v1203
      %v1217 = vadd.f32 %v1216, %v1205
      %v1218 = vrot.slane %v1217, 4
      %v1219 = vadd.f32 %v1217, %v1218
      %v1220 = vrot.slane %v1219, 2
      %v1221 = vadd.f32 %v1219, %v1220
      %v1222 = vrot.slane %v1221, 1
      %v1223 = vadd.f32 %v1221, %v1222
      %v1224 = vadd.f32 %v1200, %v1202
      %v1225 = vadd.f32 %v1224, %v1204
      %v1226 = vadd.f32 %v1225, %v1206
      %v1227 = vrot.slane %v1226, 4
      %v1228 = vadd.f32 %v1226, %v1227
      %v1229 = vrot.slane %v1228, 2
      %v1230 = vadd.f32 %v1228, %v1229
      %v1231 = vrot.slane %v1230, 1
      %v1232 = vadd.f32 %v1230, %v1231
      %v1233 = vld [vmem:[%s8] sm:$0x1]
      %1235 = vset.pattern.permute.xlu0 0
      %1236 = vperm.xlu0 %1235, %v1233
      %v1237 = vpop.permute.xlu0 %1236
      %v1239 = vadd.f32 %v1223, %v1237
      %v1240 = vadd.f32 %v1232, %v1237
      %v1241 = vadd.f32 %v1207, %v1209
      %v1242 = vadd.f32 %v1241, %v1211
      %v1243 = vadd.f32 %v1242, %v1213
      %v1244 = vrot.slane %v1243, 4
      %v1245 = vadd.f32 %v1243, %v1244
      %v1246 = vrot.slane %v1245, 2
      %v1247 = vadd.f32 %v1245, %v1246
      %v1248 = vrot.slane %v1247, 1
      %v1249 = vadd.f32 %v1247, %v1248
      %v1250 = vadd.f32 %v1208, %v1210
      %v1251 = vadd.f32 %v1250, %v1212
      %v1252 = vadd.f32 %v1251, %v1214
      %v1253 = vrot.slane %v1252, 4
      %v1254 = vadd.f32 %v1252, %v1253
      %v1255 = vrot.slane %v1254, 2
      %v1256 = vadd.f32 %v1254, %v1255
      %v1257 = vrot.slane %v1256, 1
      %v1258 = vadd.f32 %v1256, %v1257
      %v1259 = vld [vmem:[%s8 + $0x1] sm:$0x1]
      %1261 = vset.pattern.permute.xlu0 0
      %1262 = vperm.xlu0 %1261, %v1259
      %v1263 = vpop.permute.xlu0 %1262
      %v1265 = vadd.f32 %v1249, %v1263
      %v1266 = vadd.f32 %v1258, %v1263
      %v1267 = vxor.u32 %v1239, 2147483648
      %v1268 = vxor.u32 %v1240, 2147483648
      %v1269 = vmul.f32 %v1267, 1.442695
      %v1270 = vpow.pop %v1269
      %v1271 = vmul.f32 %v1268, 1.442695
      %v1272 = vpow.pop %v1271
      %v1273 = vadd.f32 %v1270, 1.0
      %v1274 = vadd.f32 %v1272, 1.0
      %v1275 = vrcp.pop %v1273
      %v1276 = vmul.f32 1.0, %v1275
      %v1277 = vrcp.pop %v1274
      %v1278 = vmul.f32 1.0, %v1277
      %v1279 = vxor.u32 %v1265, 2147483648
      %v1280 = vxor.u32 %v1266, 2147483648
      %v1281 = vmul.f32 %v1279, 1.442695
      %v1282 = vpow.pop %v1281
      %v1283 = vmul.f32 %v1280, 1.442695
      %v1284 = vpow.pop %v1283
      %v1285 = vadd.f32 %v1282, 1.0
      %v1286 = vadd.f32 %v1284, 1.0
      %v1287 = vrcp.pop %v1285
      %v1288 = vmul.f32 1.0, %v1287
      %v1289 = vrcp.pop %v1286
      %v1290 = vmul.f32 1.0, %v1289
      %v1291 = vadd.f32 %v1276, %v1288
      %v1292 = vadd.f32 %v1278, %v1290
      %v1293 = vlaneseq
      %v1294 = vshrl.u32 %v1293, 7
      %v1295 = vsub.s32 0, %v1294
      %v1296 = vrot.slane %v1291, %v1295
      %v1297 = vlaneseq
      %v1298 = vshrl.u32 %v1297, 7
      %v1299 = vsub.s32 0, %v1298
      %v1300 = vrot.slane %v1292, %v1299
      %v1301 = vmul.f32 %v1129, %v1296
      %v1302 = vmul.f32 %v1131, %v1300
      %v1305 = vcombine.low %v1301, %v1302
      %v1307 = vmul.f32 %v424, %v1305
      %1308 = vst [vmem:[%s411] sm:$0xff] %v1307
      %v1311 = vcombine.low %v1276, %v1278
      %v1313 = vunpack.c.l.s4 1966171168
      %v1314 = vunpack.c.0.s8 %v1313
      %v1315 = vlaneseq
      %v1316 = vshrl.u32 %v1315, 7
      %v1317 = vsub.s32 %v1314, %v1316
      %v1318 = vrot.slane %v1311, %v1317
      %v1320 = vunpack.c.l.s4 1966171168
      %v1321 = vunpack.c.0.s8 %v1320
      %v1322 = vlaneseq
      %v1323 = vshrl.u32 %v1322, 7
      %v1324 = vsub.s32 %v1321, %v1323
      %v1325 = vrot.slane %v1318, %v1324
      %v1327 = vlaneseq
      %vm1328 = vcmp.ge.s32.totalorder %v1327, 0
      %vm1329 = vcmp.lt.s32.totalorder %v1327, 256
      %vm1330 = vmand %vm1328, %vm1329
      %1331 = vst.msk [vmem:[%s421] ss:$2 sm:$0x3] %vm1330, %v1325
      %v1334 = vcombine.low %v1288, %v1290
      %v1336 = vunpack.c.l.s4 1966171168
      %v1337 = vunpack.c.0.s8 %v1336
      %v1338 = vlaneseq
      %v1339 = vshrl.u32 %v1338, 7
      %v1340 = vsub.s32 %v1337, %v1339
      %v1341 = vrot.slane %v1334, %v1340
      %v1343 = vunpack.c.l.s4 1966171168
      %v1344 = vunpack.c.0.s8 %v1343
      %v1345 = vlaneseq
      %v1346 = vshrl.u32 %v1345, 7
      %v1347 = vsub.s32 %v1344, %v1346
      %v1348 = vrot.slane %v1341, %v1347
      %s1350 = scalar_lea.vmem %s421, 1
      %1351 = vst.msk [vmem:[%s1350] ss:$2 sm:$0x3] %vm1330, %v1348
      %s1352 = smul.u32 2, %s27
      %p1353 = scmp.lt.s32.totalorder %s26, 1
      %s1354 = scalar_select %p1353, %s26, 1
      %p1355 = scmp.lt.s32.totalorder %s1352, 1
      %s1356 = scalar_select %p1355, %s1352, 1
      %s1357 = smul.addr %s1354, 2
      %s1358 = sadd.s32 %s1356, %s1357
      %s1359 = smul.addr %s1358, 4
      %s1360 = scalar_lea.vmem %s9, %s1359
      %s1361 = smul.u32 2, %s27
      %p1362 = scmp.lt.s32.totalorder %s26, 1
      %s1363 = scalar_select %p1362, %s26, 1
      %p1364 = scmp.lt.s32.totalorder %s1361, 1
      %s1365 = scalar_select %p1364, %s1361, 1
      %s1366 = smul.addr %s1363, 2
      %s1367 = sadd.s32 %s1365, %s1366
      %s1368 = smul.addr %s1367, 2
      %s1369 = scalar_lea.vmem %s10, %s1368
      // Predicated region
      $region57: #{enhanced_color_attention.1} parent=55 // pred_check
        %p1370 = pneg %p250
      $region58: #{enhanced_color_attention.1} parent=55 // pred_check_branch
        %1372 = sbr.rel (%p1370) target = $region60
      $region59: #{enhanced_color_attention.1} parent=55 // pred_region
        %s1373 = smul.u32 2, %s27
      $region60: #{enhanced_color_attention.1} parent=55 // pred_fallthru
        _
      // Predicated region
      $region61: #{enhanced_color_attention.1} parent=55 // pred_check
        %p1374 = pneg %p278
      $region62: #{enhanced_color_attention.1} parent=55 // pred_check_branch
        %1376 = sbr.rel (%p1374) target = $region64
      $region63: #{enhanced_color_attention.1} parent=55 // pred_region
        %s1377 = smul.u32 2, %s27
      $region64: #{enhanced_color_attention.1} parent=55 // pred_fallthru
        _
    $region56: #{enhanced_color_attention.1} parent=5 // pred_fallthru
      _
    %p1378 = scmp.le.s32.totalorder 2, %s17
    // Predicated region
    $region65: #{enhanced_color_attention.1} parent=5 // pred_check
      %p1379 = pneg %p1378
    $region66: #{enhanced_color_attention.1} parent=5 // pred_check_branch
      %1381 = sbr.rel (%p1379) target = $region68
    $region67: #{enhanced_color_attention.1} parent=5 // pred_region
      %s1382 = ssub.s32 %s17, 2
      // Predicated region
      $region69: #{enhanced_color_attention.1} parent=67 // pred_check
        %p1383 = pneg %p256
      $region70: #{enhanced_color_attention.1} parent=67 // pred_check_branch
        %1385 = sbr.rel (%p1383) target = $region72
      $region71: #{enhanced_color_attention.1} parent=67 // pred_region
        %s1386 = smul.u32 2, %s29
        %p1387 = scmp.lt.s32.totalorder %s28, 1
        %s1388 = scalar_select %p1387, %s28, 1
        %p1389 = scmp.lt.s32.totalorder %s1386, 1
        %s1390 = scalar_select %p1389, %s1386, 1
        %s1391 = smul.addr %s1388, 2
        %s1392 = sadd.s32 %s1390, %s1391
        %s1393 = smul.addr %s1392, 4
        %s1394 = scalar_lea.vmem %s9, %s1393
      $region72: #{enhanced_color_attention.1} parent=67 // pred_fallthru
        _
      // Predicated region
      $region73: #{enhanced_color_attention.1} parent=67 // pred_check
        %p1395 = pneg %p284
      $region74: #{enhanced_color_attention.1} parent=67 // pred_check_branch
        %1397 = sbr.rel (%p1395) target = $region76
      $region75: #{enhanced_color_attention.1} parent=67 // pred_region
        %s1398 = smul.u32 2, %s29
        %p1399 = scmp.lt.s32.totalorder %s28, 1
        %s1400 = scalar_select %p1399, %s28, 1
        %p1401 = scmp.lt.s32.totalorder %s1398, 1
        %s1402 = scalar_select %p1401, %s1398, 1
        %s1403 = smul.addr %s1400, 2
        %s1404 = sadd.s32 %s1402, %s1403
        %s1405 = smul.addr %s1404, 2
        %s1406 = scalar_lea.vmem %s10, %s1405
      $region76: #{enhanced_color_attention.1} parent=67 // pred_fallthru
        _
    $region68: #{enhanced_color_attention.1} parent=5 // pred_fallthru
      _
  $region6: #{enhanced_color_attention.1} parent=0 // loop_footer
    %s21 = sadd.s32 1, %s17
  $region7: #{enhanced_color_attention.1} parent=0 // loop_footer_branch
    %16 = sbr.rel target = $region3
  $region8: #{enhanced_color_attention.1} parent=0 // loop_exit
    _

</llo_original>
